<compile_context>
chip_gen: v7x
topology: tpu7x:2x2x1
jax: 0.10.0
libtpu: 0.0.40
codegen_flags: <defaults>
</compile_context>

<pallas_src>
import functools
import math

import jax
import jax.numpy as jnp
from jax import lax
from jax.experimental import pallas as pl
from jax.experimental.pallas import tpu as pltpu


VMEM_LIMIT = 32 * 1024 * 1024  # safe on v5e/v6e (128 MiB) and v7x (64 MiB)


def _pick_tile(dim, target):
    """Largest usable tile: `target` if it divides `dim`, else the full dim
    (the 'block equals full array dim' escape of the (8,128) rule)."""
    if dim >= target and dim % target == 0:
        return target
    return dim


def _gelu(y):
    # tanh-approx GELU.
    # TODO(synk): HF BertModel default is exact erf GELU; tanh approx drifts slightly.
    return 0.5 * y * (1.0 + jnp.tanh(0.7978845608028654 * (y + 0.044715 * y * y * y)))


# ----------------------------------------------------------------------------
# Tiled GEMM + bias + activation
# ----------------------------------------------------------------------------

def _linear_kernel(x_ref, w_ref, b_ref, o_ref, acc_ref, *, act, n_k):
    @pl.when(pl.program_id(2) == 0)
    def _init():
        acc_ref[...] = jnp.zeros_like(acc_ref)

    acc_ref[...] += jnp.dot(x_ref[...], w_ref[...],
                            preferred_element_type=jnp.float32)

    @pl.when(pl.program_id(2) == n_k - 1)
    def _epilogue():
        y = acc_ref[...] + b_ref[...]          # bias add only once, in f32
        if act == "gelu":
            y = _gelu(y)
        elif act == "tanh":
            y = jnp.tanh(y)
        o_ref[...] = y.astype(o_ref.dtype)


def linear(x, w, b, act="none", *, tm=128, tn=128, tk=512,
           out_dtype=jnp.bfloat16):
    """out = act(x @ w + b).  bf16 MXU inputs, f32 accumulation."""
    M, K = x.shape
    N = w.shape[1]
    tm = _pick_tile(M, tm)
    tn = _pick_tile(N, tn)
    tk = _pick_tile(K, tk)
    n_k = K // tk

    cost = pl.CostEstimate(
        flops=2 * M * N * K,
        transcendentals=M * N if act != "none" else 0,
        bytes_accessed=2 * (M * K + K * N + M * N) + 4 * N)

    return pl.pallas_call(
        functools.partial(_linear_kernel, act=act, n_k=n_k),
        out_shape=jax.ShapeDtypeStruct((M, N), out_dtype),
        grid=(M // tm, N // tn, n_k),
        in_specs=[
            pl.BlockSpec((tm, tk), lambda i, j, k: (i, k)),
            pl.BlockSpec((tk, tn), lambda i, j, k: (k, j)),
            pl.BlockSpec((1, tn), lambda i, j, k: (0, j)),
        ],
        out_specs=pl.BlockSpec((tm, tn), lambda i, j, k: (i, j)),
        scratch_shapes=[pltpu.VMEM((tm, tn), jnp.float32)],
        compiler_params=pltpu.CompilerParams(
            dimension_semantics=("parallel", "parallel", "arbitrary"),
            vmem_limit_bytes=VMEM_LIMIT),
        cost_estimate=cost,
    )(x.astype(jnp.bfloat16), w.astype(jnp.bfloat16),
      b.reshape(1, N).astype(jnp.float32))


# ----------------------------------------------------------------------------
# Tiled GEMM + bias + residual-add + LayerNorm (fused epilogue)
# ----------------------------------------------------------------------------

def _linear_add_ln_kernel(x_ref, w_ref, b_ref, r_ref, g_ref, beta_ref,
                          o_ref, acc_ref, *, eps, n_k):
    @pl.when(pl.program_id(1) == 0)
    def _init():
        acc_ref[...] = jnp.zeros_like(acc_ref)

    acc_ref[...] += jnp.dot(x_ref[...], w_ref[...],
                            preferred_element_type=jnp.float32)

    @pl.when(pl.program_id(1) == n_k - 1)
    def _epilogue():
        h = acc_ref[...] + b_ref[...] + r_ref[...].astype(jnp.float32)
        mu = jnp.mean(h, axis=-1, keepdims=True)
        var = jnp.mean((h - mu) * (h - mu), axis=-1, keepdims=True)
        o_ref[...] = ((h - mu) * lax.rsqrt(var + eps)
                      * g_ref[...] + beta_ref[...]).astype(o_ref.dtype)


def linear_add_ln(x, w, b, residual, gamma, beta, *, eps=1e-12,
                  tm=128, tk=512, out_dtype=jnp.bfloat16):
    """out = LayerNorm(x @ w + b + residual).  Full N per tile (LN spans N)."""
    M, K = x.shape
    N = w.shape[1]
    tm = _pick_tile(M, tm)
    tk = _pick_tile(K, tk)
    n_k = K // tk

    cost = pl.CostEstimate(
        flops=2 * M * N * K + 8 * M * N,
        transcendentals=M,
        bytes_accessed=2 * (M * K + K * N + 2 * M * N) + 12 * N)

    return pl.pallas_call(
        functools.partial(_linear_add_ln_kernel, eps=eps, n_k=n_k),
        out_shape=jax.ShapeDtypeStruct((M, N), out_dtype),
        grid=(M // tm, n_k),
        in_specs=[
            pl.BlockSpec((tm, tk), lambda i, k: (i, k)),
            pl.BlockSpec((tk, N), lambda i, k: (k, 0)),
            pl.BlockSpec((1, N), lambda i, k: (0, 0)),
            pl.BlockSpec((tm, N), lambda i, k: (i, 0)),
            pl.BlockSpec((1, N), lambda i, k: (0, 0)),
            pl.BlockSpec((1, N), lambda i, k: (0, 0)),
        ],
        out_specs=pl.BlockSpec((tm, N), lambda i, k: (i, 0)),
        scratch_shapes=[pltpu.VMEM((tm, N), jnp.float32)],
        compiler_params=pltpu.CompilerParams(
            dimension_semantics=("parallel", "arbitrary"),
            vmem_limit_bytes=VMEM_LIMIT),
        cost_estimate=cost,
    )(x.astype(jnp.bfloat16), w.astype(jnp.bfloat16),
      b.reshape(1, N).astype(jnp.float32),
      residual,
      gamma.reshape(1, N).astype(jnp.float32),
      beta.reshape(1, N).astype(jnp.float32))


# ----------------------------------------------------------------------------
# Row-tiled LayerNorm (embeddings)
# ----------------------------------------------------------------------------

def _ln_kernel(x_ref, g_ref, b_ref, o_ref, *, eps):
    h = x_ref[...].astype(jnp.float32)
    mu = jnp.mean(h, axis=-1, keepdims=True)
    var = jnp.mean((h - mu) * (h - mu), axis=-1, keepdims=True)
    o_ref[...] = ((h - mu) * lax.rsqrt(var + eps)
                  * g_ref[...] + b_ref[...]).astype(o_ref.dtype)


def layernorm(x, gamma, beta, *, eps=1e-12, tm=512, out_dtype=jnp.bfloat16):
    M, H = x.shape
    tm = _pick_tile(M, tm)
    return pl.pallas_call(
        functools.partial(_ln_kernel, eps=eps),
        out_shape=jax.ShapeDtypeStruct((M, H), out_dtype),
        grid=(M // tm,),
        in_specs=[
            pl.BlockSpec((tm, H), lambda i: (i, 0)),
            pl.BlockSpec((1, H), lambda i: (0, 0)),
            pl.BlockSpec((1, H), lambda i: (0, 0)),
        ],
        out_specs=pl.BlockSpec((tm, H), lambda i: (i, 0)),
        compiler_params=pltpu.CompilerParams(
            dimension_semantics=("parallel",),
            vmem_limit_bytes=VMEM_LIMIT),
    )(x, gamma.reshape(1, H).astype(jnp.float32),
      beta.reshape(1, H).astype(jnp.float32))


# ----------------------------------------------------------------------------
# Attention: grid over batch, (1, S, H) blocks — H stays the lane dimension.
# ----------------------------------------------------------------------------

def _attn_kernel(q_ref, k_ref, v_ref, bias_ref, o_ref, *, n_heads, scale):
    q = q_ref[0]          # (S, H) bf16
    k = k_ref[0]
    v = v_ref[0]
    bias = bias_ref[0]    # (1, S) f32 additive mask bias
    S, H = q.shape
    dH = H // n_heads

    outs = []
    for h in range(n_heads):                       # static unroll over heads
        sl = slice(h * dH, (h + 1) * dH)
        qh, kh, vh = q[:, sl], k[:, sl], v[:, sl]  # (S, dH)
        # contract dH on both operands directly (no in-kernel k.T transpose)
        s = lax.dot_general(qh, kh, (((1,), (1,)), ((), ())),
                            preferred_element_type=jnp.float32) * scale
        s = s + bias                               # f32 logits + f32 mask bias
        m = jnp.max(s, axis=-1, keepdims=True)
        p = jnp.exp(s - m)
        denom = jnp.sum(p, axis=-1, keepdims=True)
        p = p * pl.reciprocal(denom, approx=True)  # EUP divide
        outs.append(jnp.dot(p.astype(vh.dtype), vh,
                            preferred_element_type=jnp.float32))
    o_ref[0] = jnp.concatenate(outs, axis=-1).astype(o_ref.dtype)


def attention(q, k, v, bias, *, n_heads):
    """q,k,v: (B, S, H) bf16; bias: (B, 1, S) f32 additive mask bias."""
    B, S, H = q.shape
    scale = 1.0 / math.sqrt(H // n_heads)
    qkv_spec = pl.BlockSpec((1, S, H), lambda b: (b, 0, 0))
    return pl.pallas_call(
        functools.partial(_attn_kernel, n_heads=n_heads, scale=scale),
        out_shape=jax.ShapeDtypeStruct((B, S, H), q.dtype),
        grid=(B,),
        in_specs=[
            qkv_spec,
            pl.BlockSpec((1, S, H), lambda b: (b, 0, 0)),
            pl.BlockSpec((1, S, H), lambda b: (b, 0, 0)),
            pl.BlockSpec((1, 1, S), lambda b: (b, 0, 0)),
        ],
        out_specs=pl.BlockSpec((1, S, H), lambda b: (b, 0, 0)),
        compiler_params=pltpu.CompilerParams(
            dimension_semantics=("parallel",),
            vmem_limit_bytes=VMEM_LIMIT),
    )(q, k, v, bias)


# ----------------------------------------------------------------------------
# Synthetic BERT parameters (deterministic init; MXU weights pre-cast to bf16)
# ----------------------------------------------------------------------------

def init_params(key, *, vocab, hidden, ffn, n_layers, n_heads, max_pos):
    def norm_bf16(k, shape):
        return (0.02 * jax.random.normal(k, shape, dtype=jnp.float32)
                ).astype(jnp.bfloat16)

    def norm_f32(k, shape):
        return 0.02 * jax.random.normal(k, shape, dtype=jnp.float32)

    keys = jax.random.split(key, 4 + n_layers)
    params = {
        "word_emb": norm_f32(keys[0], (vocab, hidden)),
        "pos_emb": norm_f32(keys[1], (max_pos, hidden)),
        "emb_ln_g": jnp.ones((hidden,), jnp.float32),
        "emb_ln_b": jnp.zeros((hidden,), jnp.float32),
        "wp": norm_bf16(keys[2], (hidden, hidden)),
        "bp": jnp.zeros((hidden,), jnp.float32),
        "layers": [],
    }
    for li in range(n_layers):
        ks = jax.random.split(keys[4 + li], 4)
        params["layers"].append({
            # fused QKV projection: (H, 3H)
            "wqkv": norm_bf16(ks[0], (hidden, 3 * hidden)),
            "bqkv": jnp.zeros((3 * hidden,), jnp.float32),
            "wo": norm_bf16(ks[1], (hidden, hidden)),
            "bo": jnp.zeros((hidden,), jnp.float32),
            "ln1_g": jnp.ones((hidden,), jnp.float32),
            "ln1_b": jnp.zeros((hidden,), jnp.float32),
            "w1": norm_bf16(ks[2], (hidden, ffn)),
            "b1": jnp.zeros((ffn,), jnp.float32),
            "w2": norm_bf16(ks[3], (ffn, hidden)),
            "b2": jnp.zeros((hidden,), jnp.float32),
            "ln2_g": jnp.ones((hidden,), jnp.float32),
            "ln2_b": jnp.zeros((hidden,), jnp.float32),
        })
    return params


# ----------------------------------------------------------------------------
# EncoderBert.forward equivalent
# ----------------------------------------------------------------------------

def encoder_bert_forward(params, x, mask, *, n_heads):
    """x: (B, S) int32 token ids; mask: (B, S) attention mask (1 = keep).

    Returns (last_hidden_states (B, S, H) f32, pooled_output (B, H) f32),
    matching BertModel's outputs[0], outputs[1].
    """
    B, S = x.shape
    H = params["word_emb"].shape[1]

    # Embeddings (gather is plain-JAX glue) + row-tiled LayerNorm (Pallas).
    emb = params["word_emb"][x] + params["pos_emb"][:S][None, :, :]   # (B,S,H) f32
    h2d = layernorm(emb.reshape(B * S, H),
                    params["emb_ln_g"], params["emb_ln_b"])           # bf16

    # Additive attention-mask bias, BERT convention: (1-mask) * -10000 (kept f32).
    bias = ((1.0 - mask.astype(jnp.float32)) * -10000.0).reshape(B, 1, S)

    for lp in params["layers"]:
        # Fused QKV projection: one GEMM instead of three.
        qkv = linear(h2d, lp["wqkv"], lp["bqkv"])                     # (B*S, 3H)
        q = qkv[:, 0 * H:1 * H].reshape(B, S, H)
        k = qkv[:, 1 * H:2 * H].reshape(B, S, H)
        v = qkv[:, 2 * H:3 * H].reshape(B, S, H)

        ao = attention(q, k, v, bias, n_heads=n_heads)                # (B, S, H)
        ao = ao.reshape(B * S, H)

        # Out-projection with fused residual-add + LayerNorm epilogue.
        h2d = linear_add_ln(ao, lp["wo"], lp["bo"], h2d,
                            lp["ln1_g"], lp["ln1_b"])

        # FFN: up-proj + GELU, then down-proj with fused add + LayerNorm.
        f = linear(h2d, lp["w1"], lp["b1"], act="gelu")
        h2d = linear_add_ln(f, lp["w2"], lp["b2"], h2d,
                            lp["ln2_g"], lp["ln2_b"])

    last_hidden = h2d.astype(jnp.float32).reshape(B, S, H)
    cls = h2d.reshape(B, S, H)[:, 0, :]                               # (B, H)
    pooled = linear(cls, params["wp"], params["bp"], act="tanh",
                    out_dtype=jnp.float32)                            # (B, H)
    # TODO(synk): position_weight (pos_weight) path of the custom BertModel has
    # no public reference semantics; only the standard attention-mask path is
    # implemented.
    return last_hidden, pooled


# ----------------------------------------------------------------------------
# main
# ----------------------------------------------------------------------------

if __name__ == "__main__":
    B, S = 2, 8
    VOCAB, HIDDEN, FFN, LAYERS, HEADS, MAX_POS = 64, 32, 64, 2, 4, 32

    key = jax.random.PRNGKey(0)
    kp, kx = jax.random.split(key)
    params = init_params(kp, vocab=VOCAB, hidden=HIDDEN, ffn=FFN,
                         n_layers=LAYERS, n_heads=HEADS, max_pos=MAX_POS)

    x = jax.random.randint(kx, (B, S), 0, VOCAB, dtype=jnp.int32)
    mask = jnp.ones((B, S), dtype=jnp.float32).at[1, -2:].set(0.0)

    fwd = jax.jit(functools.partial(encoder_bert_forward, n_heads=HEADS))
    last_hidden, pooled = fwd(params, x, mask)
    jax.block_until_ready((last_hidden, pooled))

    assert last_hidden.shape == (B, S, HIDDEN)
    assert pooled.shape == (B, HIDDEN)
    assert bool(jnp.all(jnp.isfinite(last_hidden)))
    assert bool(jnp.all(jnp.isfinite(pooled)))
    print("KERNEL_OK")
</pallas_src>

<mosaic_0001>
module attributes {stable_mosaic.version = 11 : i64} {
  func.func @_ln_kernel(%arg0: i32, %arg1: memref<16x32xf32, #tpu.memory_space<vmem>>, %arg2: memref<1x32xf32, #tpu.memory_space<vmem>>, %arg3: memref<1x32xf32, #tpu.memory_space<vmem>>, %arg4: memref<16x32xbf16, #tpu.memory_space<vmem>>) attributes {dimension_semantics = [#tpu.dimension_semantics<parallel>], iteration_bounds = array<i64: 1>, scalar_prefetch = 0 : i64, scratch_operands = 0 : i64, tpu.core_type = #tpu.core_type<tc>, window_params = [{transform_indices = @transform_0, window_bounds = array<i64: 16, 32>}, {pipeline_mode = #tpu.pipeline_mode<synchronous>, transform_indices = @transform_1, window_bounds = array<i64: 1, 32>}, {pipeline_mode = #tpu.pipeline_mode<synchronous>, transform_indices = @transform_2, window_bounds = array<i64: 1, 32>}, {transform_indices = @transform_3, window_bounds = array<i64: 16, 32>}]} {
    %c0 = arith.constant 0 : index
    %c0_0 = arith.constant 0 : index
    %0 = vector.load %arg1[%c0, %c0_0] : memref<16x32xf32, #tpu.memory_space<vmem>>, vector<16x32xf32>
    %cst = arith.constant dense<0.000000e+00> : vector<16xf32>
    %1 = vector.multi_reduction <add>, %0, %cst [1] : vector<16x32xf32> to vector<16xf32>
    %2 = vector.shape_cast %1 : vector<16xf32> to vector<16x1xf32>
    %cst_1 = arith.constant 3.200000e+01 : f32
    %3 = vector.broadcast %cst_1 : f32 to vector<16x1xf32>
    %4 = arith.divf %2, %3 : vector<16x1xf32>
    %5 = vector.broadcast %4 : vector<16x1xf32> to vector<16x32xf32>
    %6 = arith.subf %0, %5 : vector<16x32xf32>
    %7 = vector.broadcast %4 : vector<16x1xf32> to vector<16x32xf32>
    %8 = arith.subf %0, %7 : vector<16x32xf32>
    %9 = arith.mulf %6, %8 : vector<16x32xf32>
    %cst_2 = arith.constant dense<0.000000e+00> : vector<16xf32>
    %10 = vector.multi_reduction <add>, %9, %cst_2 [1] : vector<16x32xf32> to vector<16xf32>
    %11 = vector.shape_cast %10 : vector<16xf32> to vector<16x1xf32>
    %cst_3 = arith.constant 3.200000e+01 : f32
    %12 = vector.broadcast %cst_3 : f32 to vector<16x1xf32>
    %13 = arith.divf %11, %12 : vector<16x1xf32>
    %14 = vector.broadcast %4 : vector<16x1xf32> to vector<16x32xf32>
    %15 = arith.subf %0, %14 : vector<16x32xf32>
    %cst_4 = arith.constant 9.99999996E-13 : f32
    %16 = vector.broadcast %cst_4 : f32 to vector<16x1xf32>
    %17 = arith.addf %13, %16 : vector<16x1xf32>
    %18 = math.rsqrt %17 : vector<16x1xf32>
    %19 = vector.broadcast %18 : vector<16x1xf32> to vector<16x32xf32>
    %20 = arith.mulf %15, %19 : vector<16x32xf32>
    %c0_5 = arith.constant 0 : index
    %c0_6 = arith.constant 0 : index
    %21 = vector.load %arg2[%c0_5, %c0_6] : memref<1x32xf32, #tpu.memory_space<vmem>>, vector<1x32xf32>
    %22 = vector.broadcast %21 : vector<1x32xf32> to vector<16x32xf32>
    %23 = arith.mulf %20, %22 : vector<16x32xf32>
    %c0_7 = arith.constant 0 : index
    %c0_8 = arith.constant 0 : index
    %24 = vector.load %arg3[%c0_7, %c0_8] : memref<1x32xf32, #tpu.memory_space<vmem>>, vector<1x32xf32>
    %25 = vector.broadcast %24 : vector<1x32xf32> to vector<16x32xf32>
    %26 = arith.addf %23, %25 : vector<16x32xf32>
    %27 = arith.truncf %26 : vector<16x32xf32> to vector<16x32xbf16>
    %c0_9 = arith.constant 0 : index
    %c0_10 = arith.constant 0 : index
    %28 = vector.load %arg4[%c0_9, %c0_10] : memref<16x32xbf16, #tpu.memory_space<vmem>>, vector<16x32xbf16>
    tpu.vector_store %arg4[%c0_9, %c0_10], %27 {strides = array<i32>} : memref<16x32xbf16, #tpu.memory_space<vmem>>, vector<16x32xbf16>,
    return
  }
  func.func @transform_0(%arg0: i32) -> (i32, i32) {
    %c0_i32 = arith.constant 0 : i32
    %c0_i32_0 = arith.constant 0 : i32
    return %arg0, %c0_i32 : i32, i32
  }
  func.func @transform_1(%arg0: i32) -> (i32, i32) {
    %c0_i32 = arith.constant 0 : i32
    %c0_i32_0 = arith.constant 0 : i32
    %c0_i32_1 = arith.constant 0 : i32
    return %c0_i32, %c0_i32_0 : i32, i32
  }
  func.func @transform_2(%arg0: i32) -> (i32, i32) {
    %c0_i32 = arith.constant 0 : i32
    %c0_i32_0 = arith.constant 0 : i32
    %c0_i32_1 = arith.constant 0 : i32
    return %c0_i32, %c0_i32_0 : i32, i32
  }
  func.func @transform_3(%arg0: i32) -> (i32, i32) {
    %c0_i32 = arith.constant 0 : i32
    %c0_i32_0 = arith.constant 0 : i32
    return %arg0, %c0_i32 : i32, i32
  }
}

module attributes {stable_mosaic.version = 11 : i64} {
  func.func @_linear_kernel(%arg0: i32, %arg1: i32, %arg2: i32, %arg3: memref<16x32xbf16, #tpu.memory_space<vmem>>, %arg4: memref<32x96xbf16, #tpu.memory_space<vmem>>, %arg5: memref<1x96xf32, #tpu.memory_space<vmem>>, %arg6: memref<16x96xbf16, #tpu.memory_space<vmem>>, %arg7: memref<16x96xf32, #tpu.memory_space<vmem>>) attributes {dimension_semantics = [#tpu.dimension_semantics<parallel>, #tpu.dimension_semantics<parallel>, #tpu.dimension_semantics<arbitrary>], iteration_bounds = array<i64: 1, 1, 1>, scalar_prefetch = 0 : i64, scratch_operands = 1 : i64, tpu.core_type = #tpu.core_type<tc>, window_params = [{transform_indices = @transform_0, window_bounds = array<i64: 16, 32>}, {transform_indices = @transform_1, window_bounds = array<i64: 32, 96>}, {transform_indices = @transform_2, window_bounds = array<i64: 1, 96>}, {transform_indices = @transform_3, window_bounds = array<i64: 16, 96>}]} {
    %c0_i32 = arith.constant 0 : i32
    %0 = arith.cmpi eq, %arg2, %c0_i32 : i32
    %1 = arith.extui %0 : i1 to i32
    %c0_i32_0 = arith.constant 0 : i32
    %2 = arith.cmpi ne, %1, %c0_i32_0 : i32
    scf.if %2 {
      %cst_10 = arith.constant 0.000000e+00 : f32
      %12 = vector.broadcast %cst_10 : f32 to vector<16x96xf32>
      %c0_11 = arith.constant 0 : index
      %c0_12 = arith.constant 0 : index
      %13 = vector.load %arg7[%c0_11, %c0_12] : memref<16x96xf32, #tpu.memory_space<vmem>>, vector<16x96xf32>
      tpu.vector_store %arg7[%c0_11, %c0_12], %12 {strides = array<i32>} : memref<16x96xf32, #tpu.memory_space<vmem>>, vector<16x96xf32>,
    } else {
    }
    %c0 = arith.constant 0 : index
    %c0_1 = arith.constant 0 : index
    %3 = vector.load %arg7[%c0, %c0_1] : memref<16x96xf32, #tpu.memory_space<vmem>>, vector<16x96xf32>
    %c0_2 = arith.constant 0 : index
    %c0_3 = arith.constant 0 : index
    %4 = vector.load %arg3[%c0_2, %c0_3] : memref<16x32xbf16, #tpu.memory_space<vmem>>, vector<16x32xbf16>
    %c0_4 = arith.constant 0 : index
    %c0_5 = arith.constant 0 : index
    %5 = vector.load %arg4[%c0_4, %c0_5] : memref<32x96xbf16, #tpu.memory_space<vmem>>, vector<32x96xbf16>
    %cst = arith.constant dense<0.000000e+00> : vector<16x96xf32>
    %6 = tpu.matmul %4, %5, %cst {dimension_numbers = #tpu.dot_dimension_numbers<[1], [0], [0], [1], [0, 0, 1, 1], [], []>} : vector<16x32xbf16>, vector<32x96xbf16>, vector<16x96xf32> -> vector<16x96xf32>
    %7 = arith.addf %3, %6 : vector<16x96xf32>
    %c0_6 = arith.constant 0 : index
    %c0_7 = arith.constant 0 : index
    %8 = vector.load %arg7[%c0_6, %c0_7] : memref<16x96xf32, #tpu.memory_space<vmem>>, vector<16x96xf32>
    tpu.vector_store %arg7[%c0_6, %c0_7], %7 {strides = array<i32>} : memref<16x96xf32, #tpu.memory_space<vmem>>, vector<16x96xf32>,
    %c0_i32_8 = arith.constant 0 : i32
    %9 = arith.cmpi eq, %arg2, %c0_i32_8 : i32
    %10 = arith.extui %9 : i1 to i32
    %c0_i32_9 = arith.constant 0 : i32
    %11 = arith.cmpi ne, %10, %c0_i32_9 : i32
    scf.if %11 {
      %c0_10 = arith.constant 0 : index
      %c0_11 = arith.constant 0 : index
      %12 = vector.load %arg7[%c0_10, %c0_11] : memref<16x96xf32, #tpu.memory_space<vmem>>, vector<16x96xf32>
      %c0_12 = arith.constant 0 : index
      %c0_13 = arith.constant 0 : index
      %13 = vector.load %arg5[%c0_12, %c0_13] : memref<1x96xf32, #tpu.memory_space<vmem>>, vector<1x96xf32>
      %14 = vector.broadcast %13 : vector<1x96xf32> to vector<16x96xf32>
      %15 = arith.addf %12, %14 : vector<16x96xf32>
      %16 = arith.truncf %15 : vector<16x96xf32> to vector<16x96xbf16>
      %c0_14 = arith.constant 0 : index
      %c0_15 = arith.constant 0 : index
      %17 = vector.load %arg6[%c0_14, %c0_15] : memref<16x96xbf16, #tpu.memory_space<vmem>>, vector<16x96xbf16>
      tpu.vector_store %arg6[%c0_14, %c0_15], %16 {strides = array<i32>} : memref<16x96xbf16, #tpu.memory_space<vmem>>, vector<16x96xbf16>,
    } else {
    }
    return
  }
  func.func @transform_0(%arg0: i32, %arg1: i32, %arg2: i32) -> (i32, i32) {
    %c0_i32 = arith.constant 0 : i32
    return %arg0, %arg2 : i32, i32
  }
  func.func @transform_1(%arg0: i32, %arg1: i32, %arg2: i32) -> (i32, i32) {
    %c0_i32 = arith.constant 0 : i32
    return %arg2, %arg1 : i32, i32
  }
  func.func @transform_2(%arg0: i32, %arg1: i32, %arg2: i32) -> (i32, i32) {
    %c0_i32 = arith.constant 0 : i32
    %c0_i32_0 = arith.constant 0 : i32
    return %c0_i32, %arg1 : i32, i32
  }
  func.func @transform_3(%arg0: i32, %arg1: i32, %arg2: i32) -> (i32, i32) {
    %c0_i32 = arith.constant 0 : i32
    return %arg0, %arg1 : i32, i32
  }
}

module attributes {stable_mosaic.version = 11 : i64} {
  func.func @_attn_kernel(%arg0: i32, %arg1: memref<1x8x32xbf16, #tpu.memory_space<vmem>>, %arg2: memref<1x8x32xbf16, #tpu.memory_space<vmem>>, %arg3: memref<1x8x32xbf16, #tpu.memory_space<vmem>>, %arg4: memref<1x1x8xf32, #tpu.memory_space<vmem>>, %arg5: memref<1x8x32xbf16, #tpu.memory_space<vmem>>) attributes {dimension_semantics = [#tpu.dimension_semantics<parallel>], iteration_bounds = array<i64: 2>, scalar_prefetch = 0 : i64, scratch_operands = 0 : i64, tpu.core_type = #tpu.core_type<tc>, window_params = [{transform_indices = @transform_0, window_bounds = array<i64: 1, 8, 32>}, {transform_indices = @transform_1, window_bounds = array<i64: 1, 8, 32>}, {transform_indices = @transform_2, window_bounds = array<i64: 1, 8, 32>}, {transform_indices = @transform_3, window_bounds = array<i64: 1, 1, 8>}, {transform_indices = @transform_4, window_bounds = array<i64: 1, 8, 32>}]} {
    %c0 = arith.constant 0 : index
    %c0_0 = arith.constant 0 : index
    %c0_1 = arith.constant 0 : index
    %0 = vector.load %arg1[%c0, %c0_0, %c0_1] : memref<1x8x32xbf16, #tpu.memory_space<vmem>>, vector<1x8x32xbf16>
    %1 = vector.shape_cast %0 : vector<1x8x32xbf16> to vector<8x32xbf16>
    %c0_2 = arith.constant 0 : index
    %c0_3 = arith.constant 0 : index
    %c0_4 = arith.constant 0 : index
    %2 = vector.load %arg2[%c0_2, %c0_3, %c0_4] : memref<1x8x32xbf16, #tpu.memory_space<vmem>>, vector<1x8x32xbf16>
    %3 = vector.shape_cast %2 : vector<1x8x32xbf16> to vector<8x32xbf16>
    %c0_5 = arith.constant 0 : index
    %c0_6 = arith.constant 0 : index
    %c0_7 = arith.constant 0 : index
    %4 = vector.load %arg3[%c0_5, %c0_6, %c0_7] : memref<1x8x32xbf16, #tpu.memory_space<vmem>>, vector<1x8x32xbf16>
    %5 = vector.shape_cast %4 : vector<1x8x32xbf16> to vector<8x32xbf16>
    %c0_8 = arith.constant 0 : index
    %c0_9 = arith.constant 0 : index
    %c0_10 = arith.constant 0 : index
    %6 = vector.load %arg4[%c0_8, %c0_9, %c0_10] : memref<1x1x8xf32, #tpu.memory_space<vmem>>, vector<1x1x8xf32>
    %7 = vector.shape_cast %6 : vector<1x1x8xf32> to vector<1x8xf32>
    %8 = vector.extract_strided_slice %1 {offsets = [0, 0], sizes = [8, 8], strides = [1, 1]} : vector<8x32xbf16> to vector<8x8xbf16>
    %9 = vector.extract_strided_slice %3 {offsets = [0, 0], sizes = [8, 8], strides = [1, 1]} : vector<8x32xbf16> to vector<8x8xbf16>
    %10 = vector.extract_strided_slice %5 {offsets = [0, 0], sizes = [8, 8], strides = [1, 1]} : vector<8x32xbf16> to vector<8x8xbf16>
    %cst = arith.constant dense<0.000000e+00> : vector<8x8xf32>
    %11 = tpu.matmul %8, %9, %cst {dimension_numbers = #tpu.dot_dimension_numbers<[1], [1], [0], [0], [0, 0, 1, 0], [], []>} : vector<8x8xbf16>, vector<8x8xbf16>, vector<8x8xf32> -> vector<8x8xf32>
    %cst_11 = arith.constant 0.353553385 : f32
    %12 = vector.broadcast %cst_11 : f32 to vector<8x8xf32>
    %13 = arith.mulf %11, %12 : vector<8x8xf32>
    %14 = vector.broadcast %7 : vector<1x8xf32> to vector<8x8xf32>
    %15 = arith.addf %13, %14 : vector<8x8xf32>
    %cst_12 = arith.constant dense<0xFF800000> : vector<8xf32>
    %16 = vector.multi_reduction <maximumf>, %15, %cst_12 [1] : vector<8x8xf32> to vector<8xf32>
    %17 = vector.shape_cast %16 : vector<8xf32> to vector<8x1xf32>
    %18 = vector.broadcast %17 : vector<8x1xf32> to vector<8x8xf32>
    %19 = arith.subf %15, %18 : vector<8x8xf32>
    %20 = math.exp %19 : vector<8x8xf32>
    %cst_13 = arith.constant dense<0.000000e+00> : vector<8xf32>
    %21 = vector.multi_reduction <add>, %20, %cst_13 [1] : vector<8x8xf32> to vector<8xf32>
    %22 = vector.shape_cast %21 : vector<8xf32> to vector<8x1xf32>
    %23 = tpu.reciprocal %22 {approx = true} : vector<8x1xf32> -> vector<8x1xf32>
    %24 = vector.broadcast %23 : vector<8x1xf32> to vector<8x8xf32>
    %25 = arith.mulf %20, %24 : vector<8x8xf32>
    %26 = arith.truncf %25 : vector<8x8xf32> to vector<8x8xbf16>
    %cst_14 = arith.constant dense<0.000000e+00> : vector<8x8xf32>
    %27 = tpu.matmul %26, %10, %cst_14 {dimension_numbers = #tpu.dot_dimension_numbers<[1], [0], [0], [1], [0, 0, 1, 1], [], []>} : vector<8x8xbf16>, vector<8x8xbf16>, vector<8x8xf32> -> vector<8x8xf32>
    %28 = vector.extract_strided_slice %1 {offsets = [0, 8], sizes = [8, 8], strides = [1, 1]} : vector<8x32xbf16> to vector<8x8xbf16>
    %29 = vector.extract_strided_slice %3 {offsets = [0, 8], sizes = [8, 8], strides = [1, 1]} : vector<8x32xbf16> to vector<8x8xbf16>
    %30 = vector.extract_strided_slice %5 {offsets = [0, 8], sizes = [8, 8], strides = [1, 1]} : vector<8x32xbf16> to vector<8x8xbf16>
    %cst_15 = arith.constant dense<0.000000e+00> : vector<8x8xf32>
    %31 = tpu.matmul %28, %29, %cst_15 {dimension_numbers = #tpu.dot_dimension_numbers<[1], [1], [0], [0], [0, 0, 1, 0], [], []>} : vector<8x8xbf16>, vector<8x8xbf16>, vector<8x8xf32> -> vector<8x8xf32>
    %cst_16 = arith.constant 0.353553385 : f32
    %32 = vector.broadcast %cst_16 : f32 to vector<8x8xf32>
    %33 = arith.mulf %31, %32 : vector<8x8xf32>
    %34 = vector.broadcast %7 : vector<1x8xf32> to vector<8x8xf32>
    %35 = arith.addf %33, %34 : vector<8x8xf32>
    %cst_17 = arith.constant dense<0xFF800000> : vector<8xf32>
    %36 = vector.multi_reduction <maximumf>, %35, %cst_17 [1] : vector<8x8xf32> to vector<8xf32>
    %37 = vector.shape_cast %36 : vector<8xf32> to vector<8x1xf32>
    %38 = vector.broadcast %37 : vector<8x1xf32> to vector<8x8xf32>
    %39 = arith.subf %35, %38 : vector<8x8xf32>
    %40 = math.exp %39 : vector<8x8xf32>
    %cst_18 = arith.constant dense<0.000000e+00> : vector<8xf32>
    %41 = vector.multi_reduction <add>, %40, %cst_18 [1] : vector<8x8xf32> to vector<8xf32>
    %42 = vector.shape_cast %41 : vector<8xf32> to vector<8x1xf32>
    %43 = tpu.reciprocal %42 {approx = true} : vector<8x1xf32> -> vector<8x1xf32>
    %44 = vector.broadcast %43 : vector<8x1xf32> to vector<8x8xf32>
    %45 = arith.mulf %40, %44 : vector<8x8xf32>
    %46 = arith.truncf %45 : vector<8x8xf32> to vector<8x8xbf16>
    %cst_19 = arith.constant dense<0.000000e+00> : vector<8x8xf32>
    %47 = tpu.matmul %46, %30, %cst_19 {dimension_numbers = #tpu.dot_dimension_numbers<[1], [0], [0], [1], [0, 0, 1, 1], [], []>} : vector<8x8xbf16>, vector<8x8xbf16>, vector<8x8xf32> -> vector<8x8xf32>
    %48 = vector.extract_strided_slice %1 {offsets = [0, 16], sizes = [8, 8], strides = [1, 1]} : vector<8x32xbf16> to vector<8x8xbf16>
    %49 = vector.extract_strided_slice %3 {offsets = [0, 16], sizes = [8, 8], strides = [1, 1]} : vector<8x32xbf16> to vector<8x8xbf16>
    %50 = vector.extract_strided_slice %5 {offsets = [0, 16], sizes = [8, 8], strides = [1, 1]} : vector<8x32xbf16> to vector<8x8xbf16>
    %cst_20 = arith.constant dense<0.000000e+00> : vector<8x8xf32>
    %51 = tpu.matmul %48, %49, %cst_20 {dimension_numbers = #tpu.dot_dimension_numbers<[1], [1], [0], [0], [0, 0, 1, 0], [], []>} : vector<8x8xbf16>, vector<8x8xbf16>, vector<8x8xf32> -> vector<8x8xf32>
    %cst_21 = arith.constant 0.353553385 : f32
    %52 = vector.broadcast %cst_21 : f32 to vector<8x8xf32>
    %53 = arith.mulf %51, %52 : vector<8x8xf32>
    %54 = vector.broadcast %7 : vector<1x8xf32> to vector<8x8xf32>
    %55 = arith.addf %53, %54 : vector<8x8xf32>
    %cst_22 = arith.constant dense<0xFF800000> : vector<8xf32>
    %56 = vector.multi_reduction <maximumf>, %55, %cst_22 [1] : vector<8x8xf32> to vector<8xf32>
    %57 = vector.shape_cast %56 : vector<8xf32> to vector<8x1xf32>
    %58 = vector.broadcast %57 : vector<8x1xf32> to vector<8x8xf32>
    %59 = arith.subf %55, %58 : vector<8x8xf32>
    %60 = math.exp %59 : vector<8x8xf32>
    %cst_23 = arith.constant dense<0.000000e+00> : vector<8xf32>
    %61 = vector.multi_reduction <add>, %60, %cst_23 [1] : vector<8x8xf32> to vector<8xf32>
    %62 = vector.shape_cast %61 : vector<8xf32> to vector<8x1xf32>
    %63 = tpu.reciprocal %62 {approx = true} : vector<8x1xf32> -> vector<8x1xf32>
    %64 = vector.broadcast %63 : vector<8x1xf32> to vector<8x8xf32>
    %65 = arith.mulf %60, %64 : vector<8x8xf32>
    %66 = arith.truncf %65 : vector<8x8xf32> to vector<8x8xbf16>
    %cst_24 = arith.constant dense<0.000000e+00> : vector<8x8xf32>
    %67 = tpu.matmul %66, %50, %cst_24 {dimension_numbers = #tpu.dot_dimension_numbers<[1], [0], [0], [1], [0, 0, 1, 1], [], []>} : vector<8x8xbf16>, vector<8x8xbf16>, vector<8x8xf32> -> vector<8x8xf32>
    %68 = vector.extract_strided_slice %1 {offsets = [0, 24], sizes = [8, 8], strides = [1, 1]} : vector<8x32xbf16> to vector<8x8xbf16>
    %69 = vector.extract_strided_slice %3 {offsets = [0, 24], sizes = [8, 8], strides = [1, 1]} : vector<8x32xbf16> to vector<8x8xbf16>
    %70 = vector.extract_strided_slice %5 {offsets = [0, 24], sizes = [8, 8], strides = [1, 1]} : vector<8x32xbf16> to vector<8x8xbf16>
    %cst_25 = arith.constant dense<0.000000e+00> : vector<8x8xf32>
    %71 = tpu.matmul %68, %69, %cst_25 {dimension_numbers = #tpu.dot_dimension_numbers<[1], [1], [0], [0], [0, 0, 1, 0], [], []>} : vector<8x8xbf16>, vector<8x8xbf16>, vector<8x8xf32> -> vector<8x8xf32>
    %cst_26 = arith.constant 0.353553385 : f32
    %72 = vector.broadcast %cst_26 : f32 to vector<8x8xf32>
    %73 = arith.mulf %71, %72 : vector<8x8xf32>
    %74 = vector.broadcast %7 : vector<1x8xf32> to vector<8x8xf32>
    %75 = arith.addf %73, %74 : vector<8x8xf32>
    %cst_27 = arith.constant dense<0xFF800000> : vector<8xf32>
    %76 = vector.multi_reduction <maximumf>, %75, %cst_27 [1] : vector<8x8xf32> to vector<8xf32>
    %77 = vector.shape_cast %76 : vector<8xf32> to vector<8x1xf32>
    %78 = vector.broadcast %77 : vector<8x1xf32> to vector<8x8xf32>
    %79 = arith.subf %75, %78 : vector<8x8xf32>
    %80 = math.exp %79 : vector<8x8xf32>
    %cst_28 = arith.constant dense<0.000000e+00> : vector<8xf32>
    %81 = vector.multi_reduction <add>, %80, %cst_28 [1] : vector<8x8xf32> to vector<8xf32>
    %82 = vector.shape_cast %81 : vector<8xf32> to vector<8x1xf32>
    %83 = tpu.reciprocal %82 {approx = true} : vector<8x1xf32> -> vector<8x1xf32>
    %84 = vector.broadcast %83 : vector<8x1xf32> to vector<8x8xf32>
    %85 = arith.mulf %80, %84 : vector<8x8xf32>
    %86 = arith.truncf %85 : vector<8x8xf32> to vector<8x8xbf16>
    %cst_29 = arith.constant dense<0.000000e+00> : vector<8x8xf32>
    %87 = tpu.matmul %86, %70, %cst_29 {dimension_numbers = #tpu.dot_dimension_numbers<[1], [0], [0], [1], [0, 0, 1, 1], [], []>} : vector<8x8xbf16>, vector<8x8xbf16>, vector<8x8xf32> -> vector<8x8xf32>
    %88 = tpu.concatenate %27, %47, %67, %87 in 1 : vector<8x8xf32>, vector<8x8xf32>, vector<8x8xf32>, vector<8x8xf32> -> vector<8x32xf32>
    %89 = arith.truncf %88 : vector<8x32xf32> to vector<8x32xbf16>
    %c0_30 = arith.constant 0 : index
    %c0_31 = arith.constant 0 : index
    %c0_32 = arith.constant 0 : index
    %90 = vector.load %arg5[%c0_30, %c0_31, %c0_32] : memref<1x8x32xbf16, #tpu.memory_space<vmem>>, vector<1x8x32xbf16>
    %91 = vector.shape_cast %90 : vector<1x8x32xbf16> to vector<8x32xbf16>
    %92 = vector.shape_cast %89 : vector<8x32xbf16> to vector<1x8x32xbf16>
    tpu.vector_store %arg5[%c0_30, %c0_31, %c0_32], %92 {strides = array<i32>} : memref<1x8x32xbf16, #tpu.memory_space<vmem>>, vector<1x8x32xbf16>,
    return
  }
  func.func @transform_0(%arg0: i32) -> (i32, i32, i32) {
    %c0_i32 = arith.constant 0 : i32
    %c0_i32_0 = arith.constant 0 : i32
    %c0_i32_1 = arith.constant 0 : i32
    return %arg0, %c0_i32, %c0_i32_0 : i32, i32, i32
  }
  func.func @transform_1(%arg0: i32) -> (i32, i32, i32) {
    %c0_i32 = arith.constant 0 : i32
    %c0_i32_0 = arith.constant 0 : i32
    %c0_i32_1 = arith.constant 0 : i32
    return %arg0, %c0_i32, %c0_i32_0 : i32, i32, i32
  }
  func.func @transform_2(%arg0: i32) -> (i32, i32, i32) {
    %c0_i32 = arith.constant 0 : i32
    %c0_i32_0 = arith.constant 0 : i32
    %c0_i32_1 = arith.constant 0 : i32
    return %arg0, %c0_i32, %c0_i32_0 : i32, i32, i32
  }
  func.func @transform_3(%arg0: i32) -> (i32, i32, i32) {
    %c0_i32 = arith.constant 0 : i32
    %c0_i32_0 = arith.constant 0 : i32
    %c0_i32_1 = arith.constant 0 : i32
    return %arg0, %c0_i32, %c0_i32_0 : i32, i32, i32
  }
  func.func @transform_4(%arg0: i32) -> (i32, i32, i32) {
    %c0_i32 = arith.constant 0 : i32
    %c0_i32_0 = arith.constant 0 : i32
    %c0_i32_1 = arith.constant 0 : i32
    return %arg0, %c0_i32, %c0_i32_0 : i32, i32, i32
  }
}

module attributes {stable_mosaic.version = 11 : i64} {
  func.func @_linear_add_ln_kernel(%arg0: i32, %arg1: i32, %arg2: memref<16x32xbf16, #tpu.memory_space<vmem>>, %arg3: memref<32x32xbf16, #tpu.memory_space<vmem>>, %arg4: memref<1x32xf32, #tpu.memory_space<vmem>>, %arg5: memref<16x32xbf16, #tpu.memory_space<vmem>>, %arg6: memref<1x32xf32, #tpu.memory_space<vmem>>, %arg7: memref<1x32xf32, #tpu.memory_space<vmem>>, %arg8: memref<16x32xbf16, #tpu.memory_space<vmem>>, %arg9: memref<16x32xf32, #tpu.memory_space<vmem>>) attributes {dimension_semantics = [#tpu.dimension_semantics<parallel>, #tpu.dimension_semantics<arbitrary>], iteration_bounds = array<i64: 1, 1>, scalar_prefetch = 0 : i64, scratch_operands = 1 : i64, tpu.core_type = #tpu.core_type<tc>, window_params = [{transform_indices = @transform_0, window_bounds = array<i64: 16, 32>}, {transform_indices = @transform_1, window_bounds = array<i64: 32, 32>}, {pipeline_mode = #tpu.pipeline_mode<synchronous>, transform_indices = @transform_2, window_bounds = array<i64: 1, 32>}, {transform_indices = @transform_3, window_bounds = array<i64: 16, 32>}, {pipeline_mode = #tpu.pipeline_mode<synchronous>, transform_indices = @transform_4, window_bounds = array<i64: 1, 32>}, {pipeline_mode = #tpu.pipeline_mode<synchronous>, transform_indices = @transform_5, window_bounds = array<i64: 1, 32>}, {transform_indices = @transform_6, window_bounds = array<i64: 16, 32>}]} {
    %c0_i32 = arith.constant 0 : i32
    %0 = arith.cmpi eq, %arg1, %c0_i32 : i32
    %1 = arith.extui %0 : i1 to i32
    %c0_i32_0 = arith.constant 0 : i32
    %2 = arith.cmpi ne, %1, %c0_i32_0 : i32
    scf.if %2 {
      %cst_10 = arith.constant 0.000000e+00 : f32
      %12 = vector.broadcast %cst_10 : f32 to vector<16x32xf32>
      %c0_11 = arith.constant 0 : index
      %c0_12 = arith.constant 0 : index
      %13 = vector.load %arg9[%c0_11, %c0_12] : memref<16x32xf32, #tpu.memory_space<vmem>>, vector<16x32xf32>
      tpu.vector_store %arg9[%c0_11, %c0_12], %12 {strides = array<i32>} : memref<16x32xf32, #tpu.memory_space<vmem>>, vector<16x32xf32>,
    } else {
    }
    %c0 = arith.constant 0 : index
    %c0_1 = arith.constant 0 : index
    %3 = vector.load %arg9[%c0, %c0_1] : memref<16x32xf32, #tpu.memory_space<vmem>>, vector<16x32xf32>
    %c0_2 = arith.constant 0 : index
    %c0_3 = arith.constant 0 : index
    %4 = vector.load %arg2[%c0_2, %c0_3] : memref<16x32xbf16, #tpu.memory_space<vmem>>, vector<16x32xbf16>
    %c0_4 = arith.constant 0 : index
    %c0_5 = arith.constant 0 : index
    %5 = vector.load %arg3[%c0_4, %c0_5] : memref<32x32xbf16, #tpu.memory_space<vmem>>, vector<32x32xbf16>
    %cst = arith.constant dense<0.000000e+00> : vector<16x32xf32>
    %6 = tpu.matmul %4, %5, %cst {dimension_numbers = #tpu.dot_dimension_numbers<[1], [0], [0], [1], [0, 0, 1, 1], [], []>} : vector<16x32xbf16>, vector<32x32xbf16>, vector<16x32xf32> -> vector<16x32xf32>
    %7 = arith.addf %3, %6 : vector<16x32xf32>
    %c0_6 = arith.constant 0 : index
    %c0_7 = arith.constant 0 : index
    %8 = vector.load %arg9[%c0_6, %c0_7] : memref<16x32xf32, #tpu.memory_space<vmem>>, vector<16x32xf32>
    tpu.vector_store %arg9[%c0_6, %c0_7], %7 {strides = array<i32>} : memref<16x32xf32, #tpu.memory_space<vmem>>, vector<16x32xf32>,
    %c0_i32_8 = arith.constant 0 : i32
    %9 = arith.cmpi eq, %arg1, %c0_i32_8 : i32
    %10 = arith.extui %9 : i1 to i32
    %c0_i32_9 = arith.constant 0 : i32
    %11 = arith.cmpi ne, %10, %c0_i32_9 : i32
    scf.if %11 {
      %c0_10 = arith.constant 0 : index
      %c0_11 = arith.constant 0 : index
      %12 = vector.load %arg9[%c0_10, %c0_11] : memref<16x32xf32, #tpu.memory_space<vmem>>, vector<16x32xf32>
      %c0_12 = arith.constant 0 : index
      %c0_13 = arith.constant 0 : index
      %13 = vector.load %arg4[%c0_12, %c0_13] : memref<1x32xf32, #tpu.memory_space<vmem>>, vector<1x32xf32>
      %14 = vector.broadcast %13 : vector<1x32xf32> to vector<16x32xf32>
      %15 = arith.addf %12, %14 : vector<16x32xf32>
      %c0_14 = arith.constant 0 : index
      %c0_15 = arith.constant 0 : index
      %16 = vector.load %arg5[%c0_14, %c0_15] : memref<16x32xbf16, #tpu.memory_space<vmem>>, vector<16x32xbf16>
      %17 = arith.extf %16 : vector<16x32xbf16> to vector<16x32xf32>
      %18 = arith.addf %15, %17 : vector<16x32xf32>
      %cst_16 = arith.constant dense<0.000000e+00> : vector<16xf32>
      %19 = vector.multi_reduction <add>, %18, %cst_16 [1] : vector<16x32xf32> to vector<16xf32>
      %20 = vector.shape_cast %19 : vector<16xf32> to vector<16x1xf32>
      %cst_17 = arith.constant 3.200000e+01 : f32
      %21 = vector.broadcast %cst_17 : f32 to vector<16x1xf32>
      %22 = arith.divf %20, %21 : vector<16x1xf32>
      %23 = vector.broadcast %22 : vector<16x1xf32> to vector<16x32xf32>
      %24 = arith.subf %18, %23 : vector<16x32xf32>
      %25 = vector.broadcast %22 : vector<16x1xf32> to vector<16x32xf32>
      %26 = arith.subf %18, %25 : vector<16x32xf32>
      %27 = arith.mulf %24, %26 : vector<16x32xf32>
      %cst_18 = arith.constant dense<0.000000e+00> : vector<16xf32>
      %28 = vector.multi_reduction <add>, %27, %cst_18 [1] : vector<16x32xf32> to vector<16xf32>
      %29 = vector.shape_cast %28 : vector<16xf32> to vector<16x1xf32>
      %cst_19 = arith.constant 3.200000e+01 : f32
      %30 = vector.broadcast %cst_19 : f32 to vector<16x1xf32>
      %31 = arith.divf %29, %30 : vector<16x1xf32>
      %32 = vector.broadcast %22 : vector<16x1xf32> to vector<16x32xf32>
      %33 = arith.subf %18, %32 : vector<16x32xf32>
      %cst_20 = arith.constant 9.99999996E-13 : f32
      %34 = vector.broadcast %cst_20 : f32 to vector<16x1xf32>
      %35 = arith.addf %31, %34 : vector<16x1xf32>
      %36 = math.rsqrt %35 : vector<16x1xf32>
      %37 = vector.broadcast %36 : vector<16x1xf32> to vector<16x32xf32>
      %38 = arith.mulf %33, %37 : vector<16x32xf32>
      %c0_21 = arith.constant 0 : index
      %c0_22 = arith.constant 0 : index
      %39 = vector.load %arg6[%c0_21, %c0_22] : memref<1x32xf32, #tpu.memory_space<vmem>>, vector<1x32xf32>
      %40 = vector.broadcast %39 : vector<1x32xf32> to vector<16x32xf32>
      %41 = arith.mulf %38, %40 : vector<16x32xf32>
      %c0_23 = arith.constant 0 : index
      %c0_24 = arith.constant 0 : index
      %42 = vector.load %arg7[%c0_23, %c0_24] : memref<1x32xf32, #tpu.memory_space<vmem>>, vector<1x32xf32>
      %43 = vector.broadcast %42 : vector<1x32xf32> to vector<16x32xf32>
      %44 = arith.addf %41, %43 : vector<16x32xf32>
      %45 = arith.truncf %44 : vector<16x32xf32> to vector<16x32xbf16>
      %c0_25 = arith.constant 0 : index
      %c0_26 = arith.constant 0 : index
      %46 = vector.load %arg8[%c0_25, %c0_26] : memref<16x32xbf16, #tpu.memory_space<vmem>>, vector<16x32xbf16>
      tpu.vector_store %arg8[%c0_25, %c0_26], %45 {strides = array<i32>} : memref<16x32xbf16, #tpu.memory_space<vmem>>, vector<16x32xbf16>,
    } else {
    }
    return
  }
  func.func @transform_0(%arg0: i32, %arg1: i32) -> (i32, i32) {
    %c0_i32 = arith.constant 0 : i32
    return %arg0, %arg1 : i32, i32
  }
  func.func @transform_1(%arg0: i32, %arg1: i32) -> (i32, i32) {
    %c0_i32 = arith.constant 0 : i32
    %c0_i32_0 = arith.constant 0 : i32
    return %arg1, %c0_i32 : i32, i32
  }
  func.func @transform_2(%arg0: i32, %arg1: i32) -> (i32, i32) {
    %c0_i32 = arith.constant 0 : i32
    %c0_i32_0 = arith.constant 0 : i32
    %c0_i32_1 = arith.constant 0 : i32
    return %c0_i32, %c0_i32_0 : i32, i32
  }
  func.func @transform_3(%arg0: i32, %arg1: i32) -> (i32, i32) {
    %c0_i32 = arith.constant 0 : i32
    %c0_i32_0 = arith.constant 0 : i32
    return %arg0, %c0_i32 : i32, i32
  }
  func.func @transform_4(%arg0: i32, %arg1: i32) -> (i32, i32) {
    %c0_i32 = arith.constant 0 : i32
    %c0_i32_0 = arith.constant 0 : i32
    %c0_i32_1 = arith.constant 0 : i32
    return %c0_i32, %c0_i32_0 : i32, i32
  }
  func.func @transform_5(%arg0: i32, %arg1: i32) -> (i32, i32) {
    %c0_i32 = arith.constant 0 : i32
    %c0_i32_0 = arith.constant 0 : i32
    %c0_i32_1 = arith.constant 0 : i32
    return %c0_i32, %c0_i32_0 : i32, i32
  }
  func.func @transform_6(%arg0: i32, %arg1: i32) -> (i32, i32) {
    %c0_i32 = arith.constant 0 : i32
    %c0_i32_0 = arith.constant 0 : i32
    return %arg0, %c0_i32 : i32, i32
  }
}

module attributes {stable_mosaic.version = 11 : i64} {
  func.func @_linear_kernel(%arg0: i32, %arg1: i32, %arg2: i32, %arg3: memref<16x32xbf16, #tpu.memory_space<vmem>>, %arg4: memref<32x64xbf16, #tpu.memory_space<vmem>>, %arg5: memref<1x64xf32, #tpu.memory_space<vmem>>, %arg6: memref<16x64xbf16, #tpu.memory_space<vmem>>, %arg7: memref<16x64xf32, #tpu.memory_space<vmem>>) attributes {dimension_semantics = [#tpu.dimension_semantics<parallel>, #tpu.dimension_semantics<parallel>, #tpu.dimension_semantics<arbitrary>], iteration_bounds = array<i64: 1, 1, 1>, scalar_prefetch = 0 : i64, scratch_operands = 1 : i64, tpu.core_type = #tpu.core_type<tc>, window_params = [{transform_indices = @transform_0, window_bounds = array<i64: 16, 32>}, {transform_indices = @transform_1, window_bounds = array<i64: 32, 64>}, {transform_indices = @transform_2, window_bounds = array<i64: 1, 64>}, {transform_indices = @transform_3, window_bounds = array<i64: 16, 64>}]} {
    %c0_i32 = arith.constant 0 : i32
    %0 = arith.cmpi eq, %arg2, %c0_i32 : i32
    %1 = arith.extui %0 : i1 to i32
    %c0_i32_0 = arith.constant 0 : i32
    %2 = arith.cmpi ne, %1, %c0_i32_0 : i32
    scf.if %2 {
      %cst_10 = arith.constant 0.000000e+00 : f32
      %12 = vector.broadcast %cst_10 : f32 to vector<16x64xf32>
      %c0_11 = arith.constant 0 : index
      %c0_12 = arith.constant 0 : index
      %13 = vector.load %arg7[%c0_11, %c0_12] : memref<16x64xf32, #tpu.memory_space<vmem>>, vector<16x64xf32>
      tpu.vector_store %arg7[%c0_11, %c0_12], %12 {strides = array<i32>} : memref<16x64xf32, #tpu.memory_space<vmem>>, vector<16x64xf32>,
    } else {
    }
    %c0 = arith.constant 0 : index
    %c0_1 = arith.constant 0 : index
    %3 = vector.load %arg7[%c0, %c0_1] : memref<16x64xf32, #tpu.memory_space<vmem>>, vector<16x64xf32>
    %c0_2 = arith.constant 0 : index
    %c0_3 = arith.constant 0 : index
    %4 = vector.load %arg3[%c0_2, %c0_3] : memref<16x32xbf16, #tpu.memory_space<vmem>>, vector<16x32xbf16>
    %c0_4 = arith.constant 0 : index
    %c0_5 = arith.constant 0 : index
    %5 = vector.load %arg4[%c0_4, %c0_5] : memref<32x64xbf16, #tpu.memory_space<vmem>>, vector<32x64xbf16>
    %cst = arith.constant dense<0.000000e+00> : vector<16x64xf32>
    %6 = tpu.matmul %4, %5, %cst {dimension_numbers = #tpu.dot_dimension_numbers<[1], [0], [0], [1], [0, 0, 1, 1], [], []>} : vector<16x32xbf16>, vector<32x64xbf16>, vector<16x64xf32> -> vector<16x64xf32>
    %7 = arith.addf %3, %6 : vector<16x64xf32>
    %c0_6 = arith.constant 0 : index
    %c0_7 = arith.constant 0 : index
    %8 = vector.load %arg7[%c0_6, %c0_7] : memref<16x64xf32, #tpu.memory_space<vmem>>, vector<16x64xf32>
    tpu.vector_store %arg7[%c0_6, %c0_7], %7 {strides = array<i32>} : memref<16x64xf32, #tpu.memory_space<vmem>>, vector<16x64xf32>,
    %c0_i32_8 = arith.constant 0 : i32
    %9 = arith.cmpi eq, %arg2, %c0_i32_8 : i32
    %10 = arith.extui %9 : i1 to i32
    %c0_i32_9 = arith.constant 0 : i32
    %11 = arith.cmpi ne, %10, %c0_i32_9 : i32
    scf.if %11 {
      %c0_10 = arith.constant 0 : index
      %c0_11 = arith.constant 0 : index
      %12 = vector.load %arg7[%c0_10, %c0_11] : memref<16x64xf32, #tpu.memory_space<vmem>>, vector<16x64xf32>
      %c0_12 = arith.constant 0 : index
      %c0_13 = arith.constant 0 : index
      %13 = vector.load %arg5[%c0_12, %c0_13] : memref<1x64xf32, #tpu.memory_space<vmem>>, vector<1x64xf32>
      %14 = vector.broadcast %13 : vector<1x64xf32> to vector<16x64xf32>
      %15 = arith.addf %12, %14 : vector<16x64xf32>
      %cst_14 = arith.constant 5.000000e-01 : f32
      %16 = vector.broadcast %cst_14 : f32 to vector<16x64xf32>
      %17 = arith.mulf %16, %15 : vector<16x64xf32>
      %cst_15 = arith.constant 4.471500e-02 : f32
      %18 = vector.broadcast %cst_15 : f32 to vector<16x64xf32>
      %19 = arith.mulf %18, %15 : vector<16x64xf32>
      %20 = arith.mulf %19, %15 : vector<16x64xf32>
      %21 = arith.mulf %20, %15 : vector<16x64xf32>
      %22 = arith.addf %15, %21 : vector<16x64xf32>
      %cst_16 = arith.constant 0.797884583 : f32
      %23 = vector.broadcast %cst_16 : f32 to vector<16x64xf32>
      %24 = arith.mulf %23, %22 : vector<16x64xf32>
      %25 = math.tanh %24 : vector<16x64xf32>
      %cst_17 = arith.constant 1.000000e+00 : f32
      %26 = vector.broadcast %cst_17 : f32 to vector<16x64xf32>
      %27 = arith.addf %26, %25 : vector<16x64xf32>
      %28 = arith.mulf %17, %27 : vector<16x64xf32>
      %29 = arith.truncf %28 : vector<16x64xf32> to vector<16x64xbf16>
      %c0_18 = arith.constant 0 : index
      %c0_19 = arith.constant 0 : index
      %30 = vector.load %arg6[%c0_18, %c0_19] : memref<16x64xbf16, #tpu.memory_space<vmem>>, vector<16x64xbf16>
      tpu.vector_store %arg6[%c0_18, %c0_19], %29 {strides = array<i32>} : memref<16x64xbf16, #tpu.memory_space<vmem>>, vector<16x64xbf16>,
    } else {
    }
    return
  }
  func.func @transform_0(%arg0: i32, %arg1: i32, %arg2: i32) -> (i32, i32) {
    %c0_i32 = arith.constant 0 : i32
    return %arg0, %arg2 : i32, i32
  }
  func.func @transform_1(%arg0: i32, %arg1: i32, %arg2: i32) -> (i32, i32) {
    %c0_i32 = arith.constant 0 : i32
    return %arg2, %arg1 : i32, i32
  }
  func.func @transform_2(%arg0: i32, %arg1: i32, %arg2: i32) -> (i32, i32) {
    %c0_i32 = arith.constant 0 : i32
    %c0_i32_0 = arith.constant 0 : i32
    return %c0_i32, %arg1 : i32, i32
  }
  func.func @transform_3(%arg0: i32, %arg1: i32, %arg2: i32) -> (i32, i32) {
    %c0_i32 = arith.constant 0 : i32
    return %arg0, %arg1 : i32, i32
  }
}

module attributes {stable_mosaic.version = 11 : i64} {
  func.func @_linear_add_ln_kernel(%arg0: i32, %arg1: i32, %arg2: memref<16x64xbf16, #tpu.memory_space<vmem>>, %arg3: memref<64x32xbf16, #tpu.memory_space<vmem>>, %arg4: memref<1x32xf32, #tpu.memory_space<vmem>>, %arg5: memref<16x32xbf16, #tpu.memory_space<vmem>>, %arg6: memref<1x32xf32, #tpu.memory_space<vmem>>, %arg7: memref<1x32xf32, #tpu.memory_space<vmem>>, %arg8: memref<16x32xbf16, #tpu.memory_space<vmem>>, %arg9: memref<16x32xf32, #tpu.memory_space<vmem>>) attributes {dimension_semantics = [#tpu.dimension_semantics<parallel>, #tpu.dimension_semantics<arbitrary>], iteration_bounds = array<i64: 1, 1>, scalar_prefetch = 0 : i64, scratch_operands = 1 : i64, tpu.core_type = #tpu.core_type<tc>, window_params = [{transform_indices = @transform_0, window_bounds = array<i64: 16, 64>}, {transform_indices = @transform_1, window_bounds = array<i64: 64, 32>}, {pipeline_mode = #tpu.pipeline_mode<synchronous>, transform_indices = @transform_2, window_bounds = array<i64: 1, 32>}, {transform_indices = @transform_3, window_bounds = array<i64: 16, 32>}, {pipeline_mode = #tpu.pipeline_mode<synchronous>, transform_indices = @transform_4, window_bounds = array<i64: 1, 32>}, {pipeline_mode = #tpu.pipeline_mode<synchronous>, transform_indices = @transform_5, window_bounds = array<i64: 1, 32>}, {transform_indices = @transform_6, window_bounds = array<i64: 16, 32>}]} {
    %c0_i32 = arith.constant 0 : i32
    %0 = arith.cmpi eq, %arg1, %c0_i32 : i32
    %1 = arith.extui %0 : i1 to i32
    %c0_i32_0 = arith.constant 0 : i32
    %2 = arith.cmpi ne, %1, %c0_i32_0 : i32
    scf.if %2 {
      %cst_10 = arith.constant 0.000000e+00 : f32
      %12 = vector.broadcast %cst_10 : f32 to vector<16x32xf32>
      %c0_11 = arith.constant 0 : index
      %c0_12 = arith.constant 0 : index
      %13 = vector.load %arg9[%c0_11, %c0_12] : memref<16x32xf32, #tpu.memory_space<vmem>>, vector<16x32xf32>
      tpu.vector_store %arg9[%c0_11, %c0_12], %12 {strides = array<i32>} : memref<16x32xf32, #tpu.memory_space<vmem>>, vector<16x32xf32>,
    } else {
    }
    %c0 = arith.constant 0 : index
    %c0_1 = arith.constant 0 : index
    %3 = vector.load %arg9[%c0, %c0_1] : memref<16x32xf32, #tpu.memory_space<vmem>>, vector<16x32xf32>
    %c0_2 = arith.constant 0 : index
    %c0_3 = arith.constant 0 : index
    %4 = vector.load %arg2[%c0_2, %c0_3] : memref<16x64xbf16, #tpu.memory_space<vmem>>, vector<16x64xbf16>
    %c0_4 = arith.constant 0 : index
    %c0_5 = arith.constant 0 : index
    %5 = vector.load %arg3[%c0_4, %c0_5] : memref<64x32xbf16, #tpu.memory_space<vmem>>, vector<64x32xbf16>
    %cst = arith.constant dense<0.000000e+00> : vector<16x32xf32>
    %6 = tpu.matmul %4, %5, %cst {dimension_numbers = #tpu.dot_dimension_numbers<[1], [0], [0], [1], [0, 0, 1, 1], [], []>} : vector<16x64xbf16>, vector<64x32xbf16>, vector<16x32xf32> -> vector<16x32xf32>
    %7 = arith.addf %3, %6 : vector<16x32xf32>
    %c0_6 = arith.constant 0 : index
    %c0_7 = arith.constant 0 : index
    %8 = vector.load %arg9[%c0_6, %c0_7] : memref<16x32xf32, #tpu.memory_space<vmem>>, vector<16x32xf32>
    tpu.vector_store %arg9[%c0_6, %c0_7], %7 {strides = array<i32>} : memref<16x32xf32, #tpu.memory_space<vmem>>, vector<16x32xf32>,
    %c0_i32_8 = arith.constant 0 : i32
    %9 = arith.cmpi eq, %arg1, %c0_i32_8 : i32
    %10 = arith.extui %9 : i1 to i32
    %c0_i32_9 = arith.constant 0 : i32
    %11 = arith.cmpi ne, %10, %c0_i32_9 : i32
    scf.if %11 {
      %c0_10 = arith.constant 0 : index
      %c0_11 = arith.constant 0 : index
      %12 = vector.load %arg9[%c0_10, %c0_11] : memref<16x32xf32, #tpu.memory_space<vmem>>, vector<16x32xf32>
      %c0_12 = arith.constant 0 : index
      %c0_13 = arith.constant 0 : index
      %13 = vector.load %arg4[%c0_12, %c0_13] : memref<1x32xf32, #tpu.memory_space<vmem>>, vector<1x32xf32>
      %14 = vector.broadcast %13 : vector<1x32xf32> to vector<16x32xf32>
      %15 = arith.addf %12, %14 : vector<16x32xf32>
      %c0_14 = arith.constant 0 : index
      %c0_15 = arith.constant 0 : index
      %16 = vector.load %arg5[%c0_14, %c0_15] : memref<16x32xbf16, #tpu.memory_space<vmem>>, vector<16x32xbf16>
      %17 = arith.extf %16 : vector<16x32xbf16> to vector<16x32xf32>
      %18 = arith.addf %15, %17 : vector<16x32xf32>
      %cst_16 = arith.constant dense<0.000000e+00> : vector<16xf32>
      %19 = vector.multi_reduction <add>, %18, %cst_16 [1] : vector<16x32xf32> to vector<16xf32>
      %20 = vector.shape_cast %19 : vector<16xf32> to vector<16x1xf32>
      %cst_17 = arith.constant 3.200000e+01 : f32
      %21 = vector.broadcast %cst_17 : f32 to vector<16x1xf32>
      %22 = arith.divf %20, %21 : vector<16x1xf32>
      %23 = vector.broadcast %22 : vector<16x1xf32> to vector<16x32xf32>
      %24 = arith.subf %18, %23 : vector<16x32xf32>
      %25 = vector.broadcast %22 : vector<16x1xf32> to vector<16x32xf32>
      %26 = arith.subf %18, %25 : vector<16x32xf32>
      %27 = arith.mulf %24, %26 : vector<16x32xf32>
      %cst_18 = arith.constant dense<0.000000e+00> : vector<16xf32>
      %28 = vector.multi_reduction <add>, %27, %cst_18 [1] : vector<16x32xf32> to vector<16xf32>
      %29 = vector.shape_cast %28 : vector<16xf32> to vector<16x1xf32>
      %cst_19 = arith.constant 3.200000e+01 : f32
      %30 = vector.broadcast %cst_19 : f32 to vector<16x1xf32>
      %31 = arith.divf %29, %30 : vector<16x1xf32>
      %32 = vector.broadcast %22 : vector<16x1xf32> to vector<16x32xf32>
      %33 = arith.subf %18, %32 : vector<16x32xf32>
      %cst_20 = arith.constant 9.99999996E-13 : f32
      %34 = vector.broadcast %cst_20 : f32 to vector<16x1xf32>
      %35 = arith.addf %31, %34 : vector<16x1xf32>
      %36 = math.rsqrt %35 : vector<16x1xf32>
      %37 = vector.broadcast %36 : vector<16x1xf32> to vector<16x32xf32>
      %38 = arith.mulf %33, %37 : vector<16x32xf32>
      %c0_21 = arith.constant 0 : index
      %c0_22 = arith.constant 0 : index
      %39 = vector.load %arg6[%c0_21, %c0_22] : memref<1x32xf32, #tpu.memory_space<vmem>>, vector<1x32xf32>
      %40 = vector.broadcast %39 : vector<1x32xf32> to vector<16x32xf32>
      %41 = arith.mulf %38, %40 : vector<16x32xf32>
      %c0_23 = arith.constant 0 : index
      %c0_24 = arith.constant 0 : index
      %42 = vector.load %arg7[%c0_23, %c0_24] : memref<1x32xf32, #tpu.memory_space<vmem>>, vector<1x32xf32>
      %43 = vector.broadcast %42 : vector<1x32xf32> to vector<16x32xf32>
      %44 = arith.addf %41, %43 : vector<16x32xf32>
      %45 = arith.truncf %44 : vector<16x32xf32> to vector<16x32xbf16>
      %c0_25 = arith.constant 0 : index
      %c0_26 = arith.constant 0 : index
      %46 = vector.load %arg8[%c0_25, %c0_26] : memref<16x32xbf16, #tpu.memory_space<vmem>>, vector<16x32xbf16>
      tpu.vector_store %arg8[%c0_25, %c0_26], %45 {strides = array<i32>} : memref<16x32xbf16, #tpu.memory_space<vmem>>, vector<16x32xbf16>,
    } else {
    }
    return
  }
  func.func @transform_0(%arg0: i32, %arg1: i32) -> (i32, i32) {
    %c0_i32 = arith.constant 0 : i32
    return %arg0, %arg1 : i32, i32
  }
  func.func @transform_1(%arg0: i32, %arg1: i32) -> (i32, i32) {
    %c0_i32 = arith.constant 0 : i32
    %c0_i32_0 = arith.constant 0 : i32
    return %arg1, %c0_i32 : i32, i32
  }
  func.func @transform_2(%arg0: i32, %arg1: i32) -> (i32, i32) {
    %c0_i32 = arith.constant 0 : i32
    %c0_i32_0 = arith.constant 0 : i32
    %c0_i32_1 = arith.constant 0 : i32
    return %c0_i32, %c0_i32_0 : i32, i32
  }
  func.func @transform_3(%arg0: i32, %arg1: i32) -> (i32, i32) {
    %c0_i32 = arith.constant 0 : i32
    %c0_i32_0 = arith.constant 0 : i32
    return %arg0, %c0_i32 : i32, i32
  }
  func.func @transform_4(%arg0: i32, %arg1: i32) -> (i32, i32) {
    %c0_i32 = arith.constant 0 : i32
    %c0_i32_0 = arith.constant 0 : i32
    %c0_i32_1 = arith.constant 0 : i32
    return %c0_i32, %c0_i32_0 : i32, i32
  }
  func.func @transform_5(%arg0: i32, %arg1: i32) -> (i32, i32) {
    %c0_i32 = arith.constant 0 : i32
    %c0_i32_0 = arith.constant 0 : i32
    %c0_i32_1 = arith.constant 0 : i32
    return %c0_i32, %c0_i32_0 : i32, i32
  }
  func.func @transform_6(%arg0: i32, %arg1: i32) -> (i32, i32) {
    %c0_i32 = arith.constant 0 : i32
    %c0_i32_0 = arith.constant 0 : i32
    return %arg0, %c0_i32 : i32, i32
  }
}

module attributes {stable_mosaic.version = 11 : i64} {
  func.func @_linear_kernel(%arg0: i32, %arg1: i32, %arg2: i32, %arg3: memref<2x32xbf16, #tpu.memory_space<vmem>>, %arg4: memref<32x32xbf16, #tpu.memory_space<vmem>>, %arg5: memref<1x32xf32, #tpu.memory_space<vmem>>, %arg6: memref<2x32xf32, #tpu.memory_space<vmem>>, %arg7: memref<2x32xf32, #tpu.memory_space<vmem>>) attributes {dimension_semantics = [#tpu.dimension_semantics<parallel>, #tpu.dimension_semantics<parallel>, #tpu.dimension_semantics<arbitrary>], iteration_bounds = array<i64: 1, 1, 1>, scalar_prefetch = 0 : i64, scratch_operands = 1 : i64, tpu.core_type = #tpu.core_type<tc>, window_params = [{transform_indices = @transform_0, window_bounds = array<i64: 2, 32>}, {transform_indices = @transform_1, window_bounds = array<i64: 32, 32>}, {transform_indices = @transform_2, window_bounds = array<i64: 1, 32>}, {transform_indices = @transform_3, window_bounds = array<i64: 2, 32>}]} {
    %c0_i32 = arith.constant 0 : i32
    %0 = arith.cmpi eq, %arg2, %c0_i32 : i32
    %1 = arith.extui %0 : i1 to i32
    %c0_i32_0 = arith.constant 0 : i32
    %2 = arith.cmpi ne, %1, %c0_i32_0 : i32
    scf.if %2 {
      %cst_10 = arith.constant 0.000000e+00 : f32
      %12 = vector.broadcast %cst_10 : f32 to vector<2x32xf32>
      %c0_11 = arith.constant 0 : index
      %c0_12 = arith.constant 0 : index
      %13 = vector.load %arg7[%c0_11, %c0_12] : memref<2x32xf32, #tpu.memory_space<vmem>>, vector<2x32xf32>
      tpu.vector_store %arg7[%c0_11, %c0_12], %12 {strides = array<i32>} : memref<2x32xf32, #tpu.memory_space<vmem>>, vector<2x32xf32>,
    } else {
    }
    %c0 = arith.constant 0 : index
    %c0_1 = arith.constant 0 : index
    %3 = vector.load %arg7[%c0, %c0_1] : memref<2x32xf32, #tpu.memory_space<vmem>>, vector<2x32xf32>
    %c0_2 = arith.constant 0 : index
    %c0_3 = arith.constant 0 : index
    %4 = vector.load %arg3[%c0_2, %c0_3] : memref<2x32xbf16, #tpu.memory_space<vmem>>, vector<2x32xbf16>
    %c0_4 = arith.constant 0 : index
    %c0_5 = arith.constant 0 : index
    %5 = vector.load %arg4[%c0_4, %c0_5] : memref<32x32xbf16, #tpu.memory_space<vmem>>, vector<32x32xbf16>
    %cst = arith.constant dense<0.000000e+00> : vector<2x32xf32>
    %6 = tpu.matmul %4, %5, %cst {dimension_numbers = #tpu.dot_dimension_numbers<[1], [0], [0], [1], [0, 0, 1, 1], [], []>} : vector<2x32xbf16>, vector<32x32xbf16>, vector<2x32xf32> -> vector<2x32xf32>
    %7 = arith.addf %3, %6 : vector<2x32xf32>
    %c0_6 = arith.constant 0 : index
    %c0_7 = arith.constant 0 : index
    %8 = vector.load %arg7[%c0_6, %c0_7] : memref<2x32xf32, #tpu.memory_space<vmem>>, vector<2x32xf32>
    tpu.vector_store %arg7[%c0_6, %c0_7], %7 {strides = array<i32>} : memref<2x32xf32, #tpu.memory_space<vmem>>, vector<2x32xf32>,
    %c0_i32_8 = arith.constant 0 : i32
    %9 = arith.cmpi eq, %arg2, %c0_i32_8 : i32
    %10 = arith.extui %9 : i1 to i32
    %c0_i32_9 = arith.constant 0 : i32
    %11 = arith.cmpi ne, %10, %c0_i32_9 : i32
    scf.if %11 {
      %c0_10 = arith.constant 0 : index
      %c0_11 = arith.constant 0 : index
      %12 = vector.load %arg7[%c0_10, %c0_11] : memref<2x32xf32, #tpu.memory_space<vmem>>, vector<2x32xf32>
      %c0_12 = arith.constant 0 : index
      %c0_13 = arith.constant 0 : index
      %13 = vector.load %arg5[%c0_12, %c0_13] : memref<1x32xf32, #tpu.memory_space<vmem>>, vector<1x32xf32>
      %14 = vector.broadcast %13 : vector<1x32xf32> to vector<2x32xf32>
      %15 = arith.addf %12, %14 : vector<2x32xf32>
      %16 = math.tanh %15 : vector<2x32xf32>
      %c0_14 = arith.constant 0 : index
      %c0_15 = arith.constant 0 : index
      %17 = vector.load %arg6[%c0_14, %c0_15] : memref<2x32xf32, #tpu.memory_space<vmem>>, vector<2x32xf32>
      tpu.vector_store %arg6[%c0_14, %c0_15], %16 {strides = array<i32>} : memref<2x32xf32, #tpu.memory_space<vmem>>, vector<2x32xf32>,
    } else {
    }
    return
  }
  func.func @transform_0(%arg0: i32, %arg1: i32, %arg2: i32) -> (i32, i32) {
    %c0_i32 = arith.constant 0 : i32
    return %arg0, %arg2 : i32, i32
  }
  func.func @transform_1(%arg0: i32, %arg1: i32, %arg2: i32) -> (i32, i32) {
    %c0_i32 = arith.constant 0 : i32
    return %arg2, %arg1 : i32, i32
  }
  func.func @transform_2(%arg0: i32, %arg1: i32, %arg2: i32) -> (i32, i32) {
    %c0_i32 = arith.constant 0 : i32
    %c0_i32_0 = arith.constant 0 : i32
    return %c0_i32, %arg1 : i32, i32
  }
  func.func @transform_3(%arg0: i32, %arg1: i32, %arg2: i32) -> (i32, i32) {
    %c0_i32 = arith.constant 0 : i32
    return %arg0, %arg1 : i32, i32
  }
}

</mosaic_0001>

<llo_original>
// kernel: encoder_bert_forward.12
$region0: #{encoder_bert_forward.12}
  #allocation0 [shape = 'u32[]', space=smem, size = 0x4, offset = 0x4, fixed_abs, tag = 'smem constant byte address 0x4 - core index']
  #allocation1 [shape = 'u32[144,128]{1,0:T(1,128)}', space=vmem, size = 0x12000, scoped, tag = 'internal scratch']
  %s0 = inlined_call_operand.vmem [shape: f32[16,32], index: 0, kind: input, shape index: {}]
  %s1 = inlined_call_operand.vmem [shape: f32[1,32], index: 1, kind: input, shape index: {}]
  %s2 = inlined_call_operand.vmem [shape: f32[1,32], index: 2, kind: input, shape index: {}]
  %s3 = inlined_call_operand.vmem [shape: bf16[16,32], index: 3, kind: output, shape index: {}]
  %s4 = sld [smem:[#allocation0]]
  $region22: #{encoder_bert_forward.12} parent=0
    _
  %s6 = ssub.s32 1, %s4
  %s7 = scalar_select 0, %s6, %s4
  // Predicated region
  $region2: #{encoder_bert_forward.12} parent=0 // pred_check
    _
  $region3: #{encoder_bert_forward.12} parent=0 // pred_check_branch
    %9 = sbr.rel (0) target = $region5
  $region4: #{encoder_bert_forward.12} parent=0 // pred_region
    _
  $region5: #{encoder_bert_forward.12} parent=0 // pred_fallthru
    _
  // Predicated region
  $region6: #{encoder_bert_forward.12} parent=0 // pred_check
    _
  $region7: #{encoder_bert_forward.12} parent=0 // pred_check_branch
    %11 = sbr.rel (0) target = $region9
  $region8: #{encoder_bert_forward.12} parent=0 // pred_region
    _
  $region9: #{encoder_bert_forward.12} parent=0 // pred_fallthru
    _
  // Predicated region
  $region10: #{encoder_bert_forward.12} parent=0 // pred_check
    _
  $region11: #{encoder_bert_forward.12} parent=0 // pred_check_branch
    %13 = sbr.rel (0) target = $region13
  $region12: #{encoder_bert_forward.12} parent=0 // pred_region
    _
  $region13: #{encoder_bert_forward.12} parent=0 // pred_fallthru
    _
  %v14 = vld [vmem:[%s0] sm:$0xff]
  %v15 = vld [vmem:[%s0 + $0x8] sm:$0xff]
  %vm16 = vcmask 261120
  %v17 = vsel %vm16, %v14, 0.0
  %18 = vadd.xlane.f32.xlu0 %v17
  %v19 = vpop.xlane.xlu0 %18
  %v20 = vsel %vm16, %v15, 0.0
  %21 = vadd.xlane.f32.xlu0 %v20
  %v22 = vpop.xlane.xlu0 %21
  %v23 = vrcp.pop 32.0
  %v24 = vmul.f32 %v19, %v23
  %v25 = vmul.f32 %v22, %v23
  %v26 = vsub.f32 %v14, %v24
  %v27 = vsub.f32 %v15, %v25
  %v28 = vmul.f32 %v26, %v26
  %v29 = vmul.f32 %v27, %v27
  %v30 = vsel %vm16, %v28, 0.0
  %31 = vadd.xlane.f32.xlu0 %v30
  %v32 = vpop.xlane.xlu0 %31
  %v33 = vsel %vm16, %v29, 0.0
  %34 = vadd.xlane.f32.xlu0 %v33
  %v35 = vpop.xlane.xlu0 %34
  %v36 = vmul.f32 %v32, %v23
  %v37 = vmul.f32 %v35, %v23
  %v38 = vadd.f32 %v36, 1e-12
  %v39 = vadd.f32 %v37, 1e-12
  %v40 = vrsqrt.pop %v38
  %v41 = vrsqrt.pop %v39
  %v42 = vmul.f32 %v26, %v40
  %v43 = vmul.f32 %v27, %v41
  %v44 = vld [vmem:[%s1] sm:$0x1]
  %v46 = vlaneseq
  %v47 = vshrl.u32 %v46, 7
  %v48 = vsub.s32 0, %v47
  %v49 = vrot.slane %v44, %v48
  %v51 = vmul.f32 %v42, %v49
  %v52 = vmul.f32 %v43, %v49
  %v53 = vld [vmem:[%s2] sm:$0x1]
  %v55 = vlaneseq
  %v56 = vshrl.u32 %v55, 7
  %v57 = vsub.s32 0, %v56
  %v58 = vrot.slane %v53, %v57
  %v60 = vadd.f32 %v51, %v58
  %v61 = vadd.f32 %v52, %v58
  %v62 = vpack.c.bf16 %v61, %v60
  %v64 = vunpack.c.l.b16 %v62
  %v65 = vunpack.c.h.b16 %v62
  %v66 = vpack.c.b16 %v64, %v64
  %v67 = vpack.c.b16 %v65, %v65
  %vm70 = vcmask 257024
  %71 = vst.msk [vmem:[%s3] sm:$0xf] %vm70, %v66
  %72 = vst.msk [vmem:[%s3 + $0x4] sm:$0xf] %vm70, %v67
  // Predicated region
  $region14: #{encoder_bert_forward.12} parent=0 // pred_check
    _
  $region15: #{encoder_bert_forward.12} parent=0 // pred_check_branch
    %74 = sbr.rel (0) target = $region17
  $region16: #{encoder_bert_forward.12} parent=0 // pred_region
    _
  $region17: #{encoder_bert_forward.12} parent=0 // pred_fallthru
    _
  // Predicated region
  $region18: #{encoder_bert_forward.12} parent=0 // pred_check
    _
  $region19: #{encoder_bert_forward.12} parent=0 // pred_check_branch
    %76 = sbr.rel (0) target = $region21
  $region20: #{encoder_bert_forward.12} parent=0 // pred_region
    _
  $region21: #{encoder_bert_forward.12} parent=0 // pred_fallthru
    _

// kernel: encoder_bert_forward.13
$region0: #{encoder_bert_forward.13}
  #allocation0 [shape = 'u32[]', space=smem, size = 0x4, offset = 0x4, fixed_abs, tag = 'smem constant byte address 0x4 - core index']
  #allocation1 [shape = 'u32[144,128]{1,0:T(1,128)}', space=vmem, size = 0x12000, scoped, tag = 'internal scratch']
  #allocation2 [shape = 'f32[16,96]{1,0:T(8,128)}', space=vmem, size = 0x2000, scoped, tag = 'scratch operand']
  %s0 = inlined_call_operand.vmem [shape: bf16[16,32], index: 0, kind: input, shape index: {}]
  %s1 = inlined_call_operand.vmem [shape: bf16[32,96], index: 1, kind: input, shape index: {}]
  %s2 = inlined_call_operand.vmem [shape: f32[1,96], index: 2, kind: input, shape index: {}]
  %s3 = inlined_call_operand.vmem [shape: bf16[16,96], index: 3, kind: output, shape index: {}]
  %s4 = sld [smem:[#allocation0]]
  $region30: #{encoder_bert_forward.13} parent=0
    _
  %s6 = ssub.s32 1, %s4
  %s7 = scalar_select 0, %s6, %s4
  // Predicated region
  $region2: #{encoder_bert_forward.13} parent=0 // pred_check
    _
  $region3: #{encoder_bert_forward.13} parent=0 // pred_check_branch
    %9 = sbr.rel (0) target = $region5
  $region4: #{encoder_bert_forward.13} parent=0 // pred_region
    _
  $region5: #{encoder_bert_forward.13} parent=0 // pred_fallthru
    _
  // Predicated region
  $region6: #{encoder_bert_forward.13} parent=0 // pred_check
    _
  $region7: #{encoder_bert_forward.13} parent=0 // pred_check_branch
    %11 = sbr.rel (0) target = $region9
  $region8: #{encoder_bert_forward.13} parent=0 // pred_region
    _
  $region9: #{encoder_bert_forward.13} parent=0 // pred_fallthru
    _
  // Predicated region
  $region10: #{encoder_bert_forward.13} parent=0 // pred_check
    _
  $region11: #{encoder_bert_forward.13} parent=0 // pred_check_branch
    %13 = sbr.rel (0) target = $region13
  $region12: #{encoder_bert_forward.13} parent=0 // pred_region
    _
  $region13: #{encoder_bert_forward.13} parent=0 // pred_fallthru
    _
  %p15 = scmp.eq.s32.totalorder 0, 0
  // Predicated region
  $region14: #{encoder_bert_forward.13} parent=0 // pred_check
    %p16 = pneg %p15
  $region15: #{encoder_bert_forward.13} parent=0 // pred_check_branch
    %18 = sbr.rel (%p16) target = $region17
  $region16: #{encoder_bert_forward.13} parent=0 // pred_region
    %vm19 = vcmask 785408
    %20 = vst.msk [vmem:[#allocation2] sm:$0xff] %vm19, 0.0
    %21 = vst.msk [vmem:[#allocation2 + $0x8] sm:$0xff] %vm19, 0.0
  $region17: #{encoder_bert_forward.13} parent=0 // pred_fallthru
    _
  %v22 = vld [vmem:[#allocation2] sm:$0xff]
  %v23 = vld [vmem:[#allocation2 + $0x8] sm:$0xff]
  %v24 = vld [vmem:[%s0] sm:$0xf]
  %v25 = vld [vmem:[%s0 + $0x4] sm:$0xf]
  %v26 = vld [vmem:[%s1] sm:$0xf]
  %v27 = vld [vmem:[%s1 + $0x4] sm:$0xf]
  %v28 = vld [vmem:[%s1 + $0x8] sm:$0xf]
  %v29 = vld [vmem:[%s1 + $0xc] sm:$0xf]
  %v32 = vunpack.c.l.b16 %v24
  %v33 = vunpack.c.l.b16 %v25
  %v34 = vpack.c.b16 %v33, %v32
  %v39 = vunpack.c.l.b16 %v26
  %v40 = vunpack.c.l.b16 %v27
  %v41 = vunpack.c.l.b16 %v28
  %v42 = vunpack.c.l.b16 %v29
  %v43 = vpack.c.b16 %v40, %v39
  %v44 = vpack.c.b16 %v42, %v41
  %vm47 = vcmask 261120
  %v49 = vsel %vm47, %v34, 0
  %51 = vmatprep.subr.bf16.mxu0 0
  %52 = vmatpush1.bf16.msra.mxu0 %v43
  %53 = vmatprep.subr.bf16.mxu0 0
  %54 = vmatpush1.bf16.msra.mxu0 %v44
  %55 = vmatprep.subr.bf16.mxu0 0
  %56 = vmatpush1.bf16.msra.mxu0 0
  %57 = vmatprep.subr.bf16.mxu0 0
  %58 = vmatpush1.bf16.msra.mxu0 0
  %59 = vmatprep.subr.bf16.mxu0 0
  %60 = vmatpush1.bf16.msra.mxu0 0
  %61 = vmatprep.subr.bf16.mxu0 0
  %62 = vmatpush1.bf16.msra.mxu0 0
  %63 = vmatprep.subr.bf16.mxu0 0
  %64 = vmatpush1.bf16.msra.mxu0 0
  %65 = vmatprep.subr.bf16.mxu0 0
  %66 = vmatpush1.bf16.msra.mxu0 0
  %67 = vmatprep.subr.bf16.mxu0 0
  %68 = vmatpush1.bf16.msra.mxu0 0
  %69 = vmatprep.subr.bf16.mxu0 0
  %70 = vmatpush1.bf16.msra.mxu0 0
  %71 = vmatprep.subr.bf16.mxu0 0
  %72 = vmatpush1.bf16.msra.mxu0 0
  %73 = vmatprep.subr.bf16.mxu0 0
  %74 = vmatpush1.bf16.msra.mxu0 0
  %75 = vmatprep.subr.bf16.mxu0 0
  %76 = vmatpush1.bf16.msra.mxu0 0
  %77 = vmatprep.subr.bf16.mxu0 0
  %78 = vmatpush1.bf16.msra.mxu0 0
  %79 = vmatprep.subr.bf16.mxu0 0
  %80 = vmatpush1.bf16.msra.mxu0 0
  %81 = vmatprep.subr.bf16.mxu0 0
  %82 = vmatpush1.bf16.msra.mxu0 0
  %83 = vmatprep.mubr.bf16.mxu0 0
  %84 = vmatmul.mubr.bf16.gmra.mrb[0].mxu0 %v49
  %v85 = vpop.f32.mrb[0].mxu0
  %v86 = vadd.f32 0.0, %v85
  %v87 = vpop.f32.mrb[0].mxu0
  %v88 = vpop.f32.mrb[0].mxu0
  %v89 = vadd.f32 0.0, %v88
  %v90 = vpop.f32.mrb[0].mxu0
  %91 = vdwg.mxu0
  %v92 = vadd.f32 %v22, %v86
  %v93 = vadd.f32 %v23, %v89
  %vm94 = vcmask 785408
  %95 = vst.msk [vmem:[#allocation2] sm:$0xff] %vm94, %v92
  %96 = vst.msk [vmem:[#allocation2 + $0x8] sm:$0xff] %vm94, %v93
  // Predicated region
  $region18: #{encoder_bert_forward.13} parent=0 // pred_check
    %p97 = pneg %p15
  $region19: #{encoder_bert_forward.13} parent=0 // pred_check_branch
    %99 = sbr.rel (%p97) target = $region21
  $region20: #{encoder_bert_forward.13} parent=0 // pred_region
    %v100 = vld [vmem:[#allocation2] sm:$0xff]
    %v101 = vld [vmem:[#allocation2 + $0x8] sm:$0xff]
    %v102 = vld [vmem:[%s2] sm:$0x1]
    %v104 = vlaneseq
    %v105 = vshrl.u32 %v104, 7
    %v106 = vsub.s32 0, %v105
    %v107 = vrot.slane %v102, %v106
    %v109 = vadd.f32 %v100, %v107
    %v110 = vadd.f32 %v101, %v107
    %v111 = vpack.c.bf16 %v110, %v109
    %v113 = vunpack.c.l.b16 %v111
    %v114 = vunpack.c.h.b16 %v111
    %v115 = vpack.c.b16 %v113, %v113
    %v116 = vpack.c.b16 %v114, %v114
    %vm119 = vcmask 781312
    %120 = vst.msk [vmem:[%s3] sm:$0xf] %vm119, %v115
    %121 = vst.msk [vmem:[%s3 + $0x4] sm:$0xf] %vm119, %v116
  $region21: #{encoder_bert_forward.13} parent=0 // pred_fallthru
    _
  // Predicated region
  $region22: #{encoder_bert_forward.13} parent=0 // pred_check
    _
  $region23: #{encoder_bert_forward.13} parent=0 // pred_check_branch
    %123 = sbr.rel (0) target = $region25
  $region24: #{encoder_bert_forward.13} parent=0 // pred_region
    _
  $region25: #{encoder_bert_forward.13} parent=0 // pred_fallthru
    _
  // Predicated region
  $region26: #{encoder_bert_forward.13} parent=0 // pred_check
    _
  $region27: #{encoder_bert_forward.13} parent=0 // pred_check_branch
    %125 = sbr.rel (0) target = $region29
  $region28: #{encoder_bert_forward.13} parent=0 // pred_region
    _
  $region29: #{encoder_bert_forward.13} parent=0 // pred_fallthru
    _

// kernel: encoder_bert_forward.15
$region0: #{encoder_bert_forward.15}
  #allocation0 [shape = 'u32[]', space=smem, size = 0x4, offset = 0x4, fixed_abs, tag = 'smem constant byte address 0x4 - core index']
  #allocation1 [shape = 'u32[144,128]{1,0:T(1,128)}', space=vmem, size = 0x12000, scoped, tag = 'internal scratch']
  #allocation2 [shape = 'f32[16,32]{1,0:T(8,128)}', space=vmem, size = 0x2000, scoped, tag = 'scratch operand']
  %s0 = inlined_call_operand.vmem [shape: bf16[16,32], index: 0, kind: input, shape index: {}]
  %s1 = inlined_call_operand.vmem [shape: bf16[32,32], index: 1, kind: input, shape index: {}]
  %s2 = inlined_call_operand.vmem [shape: f32[1,32], index: 2, kind: input, shape index: {}]
  %s3 = inlined_call_operand.vmem [shape: bf16[16,32], index: 3, kind: input, shape index: {}]
  %s4 = inlined_call_operand.vmem [shape: f32[1,32], index: 4, kind: input, shape index: {}]
  %s5 = inlined_call_operand.vmem [shape: f32[1,32], index: 5, kind: input, shape index: {}]
  %s6 = inlined_call_operand.vmem [shape: bf16[16,32], index: 6, kind: output, shape index: {}]
  %s7 = sld [smem:[#allocation0]]
  $region42: #{encoder_bert_forward.15} parent=0
    _
  %s9 = ssub.s32 1, %s7
  %s10 = scalar_select 0, %s9, %s7
  // Predicated region
  $region2: #{encoder_bert_forward.15} parent=0 // pred_check
    _
  $region3: #{encoder_bert_forward.15} parent=0 // pred_check_branch
    %12 = sbr.rel (0) target = $region5
  $region4: #{encoder_bert_forward.15} parent=0 // pred_region
    _
  $region5: #{encoder_bert_forward.15} parent=0 // pred_fallthru
    _
  // Predicated region
  $region6: #{encoder_bert_forward.15} parent=0 // pred_check
    _
  $region7: #{encoder_bert_forward.15} parent=0 // pred_check_branch
    %14 = sbr.rel (0) target = $region9
  $region8: #{encoder_bert_forward.15} parent=0 // pred_region
    _
  $region9: #{encoder_bert_forward.15} parent=0 // pred_fallthru
    _
  // Predicated region
  $region10: #{encoder_bert_forward.15} parent=0 // pred_check
    _
  $region11: #{encoder_bert_forward.15} parent=0 // pred_check_branch
    %16 = sbr.rel (0) target = $region13
  $region12: #{encoder_bert_forward.15} parent=0 // pred_region
    _
  $region13: #{encoder_bert_forward.15} parent=0 // pred_fallthru
    _
  // Predicated region
  $region14: #{encoder_bert_forward.15} parent=0 // pred_check
    _
  $region15: #{encoder_bert_forward.15} parent=0 // pred_check_branch
    %18 = sbr.rel (0) target = $region17
  $region16: #{encoder_bert_forward.15} parent=0 // pred_region
    _
  $region17: #{encoder_bert_forward.15} parent=0 // pred_fallthru
    _
  // Predicated region
  $region18: #{encoder_bert_forward.15} parent=0 // pred_check
    _
  $region19: #{encoder_bert_forward.15} parent=0 // pred_check_branch
    %20 = sbr.rel (0) target = $region21
  $region20: #{encoder_bert_forward.15} parent=0 // pred_region
    _
  $region21: #{encoder_bert_forward.15} parent=0 // pred_fallthru
    _
  // Predicated region
  $region22: #{encoder_bert_forward.15} parent=0 // pred_check
    _
  $region23: #{encoder_bert_forward.15} parent=0 // pred_check_branch
    %22 = sbr.rel (0) target = $region25
  $region24: #{encoder_bert_forward.15} parent=0 // pred_region
    _
  $region25: #{encoder_bert_forward.15} parent=0 // pred_fallthru
    _
  %p24 = scmp.eq.s32.totalorder 0, 0
  // Predicated region
  $region26: #{encoder_bert_forward.15} parent=0 // pred_check
    %p25 = pneg %p24
  $region27: #{encoder_bert_forward.15} parent=0 // pred_check_branch
    %27 = sbr.rel (%p25) target = $region29
  $region28: #{encoder_bert_forward.15} parent=0 // pred_region
    %vm28 = vcmask 261120
    %29 = vst.msk [vmem:[#allocation2] sm:$0xff] %vm28, 0.0
    %30 = vst.msk [vmem:[#allocation2 + $0x8] sm:$0xff] %vm28, 0.0
  $region29: #{encoder_bert_forward.15} parent=0 // pred_fallthru
    _
  %v31 = vld [vmem:[#allocation2] sm:$0xff]
  %v32 = vld [vmem:[#allocation2 + $0x8] sm:$0xff]
  %v33 = vld [vmem:[%s0] sm:$0xf]
  %v34 = vld [vmem:[%s0 + $0x4] sm:$0xf]
  %v35 = vld [vmem:[%s1] sm:$0xf]
  %v36 = vld [vmem:[%s1 + $0x4] sm:$0xf]
  %v37 = vld [vmem:[%s1 + $0x8] sm:$0xf]
  %v38 = vld [vmem:[%s1 + $0xc] sm:$0xf]
  %v41 = vunpack.c.l.b16 %v33
  %v42 = vunpack.c.l.b16 %v34
  %v43 = vpack.c.b16 %v42, %v41
  %v48 = vunpack.c.l.b16 %v35
  %v49 = vunpack.c.l.b16 %v36
  %v50 = vunpack.c.l.b16 %v37
  %v51 = vunpack.c.l.b16 %v38
  %v52 = vpack.c.b16 %v49, %v48
  %v53 = vpack.c.b16 %v51, %v50
  %vm56 = vcmask 261120
  %v58 = vsel %vm56, %v43, 0
  %60 = vmatprep.subr.bf16.mxu0 0
  %61 = vmatpush1.bf16.msra.mxu0 %v52
  %62 = vmatprep.subr.bf16.mxu0 0
  %63 = vmatpush1.bf16.msra.mxu0 %v53
  %64 = vmatprep.subr.bf16.mxu0 0
  %65 = vmatpush1.bf16.msra.mxu0 0
  %66 = vmatprep.subr.bf16.mxu0 0
  %67 = vmatpush1.bf16.msra.mxu0 0
  %68 = vmatprep.subr.bf16.mxu0 0
  %69 = vmatpush1.bf16.msra.mxu0 0
  %70 = vmatprep.subr.bf16.mxu0 0
  %71 = vmatpush1.bf16.msra.mxu0 0
  %72 = vmatprep.subr.bf16.mxu0 0
  %73 = vmatpush1.bf16.msra.mxu0 0
  %74 = vmatprep.subr.bf16.mxu0 0
  %75 = vmatpush1.bf16.msra.mxu0 0
  %76 = vmatprep.subr.bf16.mxu0 0
  %77 = vmatpush1.bf16.msra.mxu0 0
  %78 = vmatprep.subr.bf16.mxu0 0
  %79 = vmatpush1.bf16.msra.mxu0 0
  %80 = vmatprep.subr.bf16.mxu0 0
  %81 = vmatpush1.bf16.msra.mxu0 0
  %82 = vmatprep.subr.bf16.mxu0 0
  %83 = vmatpush1.bf16.msra.mxu0 0
  %84 = vmatprep.subr.bf16.mxu0 0
  %85 = vmatpush1.bf16.msra.mxu0 0
  %86 = vmatprep.subr.bf16.mxu0 0
  %87 = vmatpush1.bf16.msra.mxu0 0
  %88 = vmatprep.subr.bf16.mxu0 0
  %89 = vmatpush1.bf16.msra.mxu0 0
  %90 = vmatprep.subr.bf16.mxu0 0
  %91 = vmatpush1.bf16.msra.mxu0 0
  %92 = vmatprep.mubr.bf16.mxu0 0
  %93 = vmatmul.mubr.bf16.gmra.mrb[0].mxu0 %v58
  %v94 = vpop.f32.mrb[0].mxu0
  %v95 = vadd.f32 0.0, %v94
  %v96 = vpop.f32.mrb[0].mxu0
  %v97 = vpop.f32.mrb[0].mxu0
  %v98 = vadd.f32 0.0, %v97
  %v99 = vpop.f32.mrb[0].mxu0
  %100 = vdwg.mxu0
  %v101 = vadd.f32 %v31, %v95
  %v102 = vadd.f32 %v32, %v98
  %103 = vst.msk [vmem:[#allocation2] sm:$0xff] %vm56, %v101
  %104 = vst.msk [vmem:[#allocation2 + $0x8] sm:$0xff] %vm56, %v102
  // Predicated region
  $region30: #{encoder_bert_forward.15} parent=0 // pred_check
    %p105 = pneg %p24
  $region31: #{encoder_bert_forward.15} parent=0 // pred_check_branch
    %107 = sbr.rel (%p105) target = $region33
  $region32: #{encoder_bert_forward.15} parent=0 // pred_region
    %v108 = vld [vmem:[#allocation2] sm:$0xff]
    %v109 = vld [vmem:[#allocation2 + $0x8] sm:$0xff]
    %v110 = vld [vmem:[%s2] sm:$0x1]
    %v112 = vlaneseq
    %v113 = vshrl.u32 %v112, 7
    %v114 = vsub.s32 0, %v113
    %v115 = vrot.slane %v110, %v114
    %v117 = vadd.f32 %v108, %v115
    %v118 = vadd.f32 %v109, %v115
    %v119 = vld [vmem:[%s3] sm:$0xf]
    %v120 = vld [vmem:[%s3 + $0x4] sm:$0xf]
    %v121 = vunpack.c.l.bf16 %v119
    %v122 = vunpack.c.l.bf16 %v120
    %v123 = vadd.f32 %v117, %v121
    %v124 = vadd.f32 %v118, %v122
    %v125 = vsel %vm56, %v123, 0.0
    %126 = vadd.xlane.f32.xlu0 %v125
    %v127 = vpop.xlane.xlu0 %126
    %v128 = vsel %vm56, %v124, 0.0
    %129 = vadd.xlane.f32.xlu0 %v128
    %v130 = vpop.xlane.xlu0 %129
    %v131 = vrcp.pop 32.0
    %v132 = vmul.f32 %v127, %v131
    %v133 = vmul.f32 %v130, %v131
    %v134 = vsub.f32 %v123, %v132
    %v135 = vsub.f32 %v124, %v133
    %v136 = vmul.f32 %v134, %v134
    %v137 = vmul.f32 %v135, %v135
    %v138 = vsel %vm56, %v136, 0.0
    %139 = vadd.xlane.f32.xlu0 %v138
    %v140 = vpop.xlane.xlu0 %139
    %v141 = vsel %vm56, %v137, 0.0
    %142 = vadd.xlane.f32.xlu0 %v141
    %v143 = vpop.xlane.xlu0 %142
    %v144 = vmul.f32 %v140, %v131
    %v145 = vmul.f32 %v143, %v131
    %v146 = vadd.f32 %v144, 1e-12
    %v147 = vadd.f32 %v145, 1e-12
    %v148 = vrsqrt.pop %v146
    %v149 = vrsqrt.pop %v147
    %v150 = vmul.f32 %v134, %v148
    %v151 = vmul.f32 %v135, %v149
    %v152 = vld [vmem:[%s4] sm:$0x1]
    %v154 = vlaneseq
    %v155 = vshrl.u32 %v154, 7
    %v156 = vsub.s32 0, %v155
    %v157 = vrot.slane %v152, %v156
    %v159 = vmul.f32 %v150, %v157
    %v160 = vmul.f32 %v151, %v157
    %v161 = vld [vmem:[%s5] sm:$0x1]
    %v163 = vlaneseq
    %v164 = vshrl.u32 %v163, 7
    %v165 = vsub.s32 0, %v164
    %v166 = vrot.slane %v161, %v165
    %v168 = vadd.f32 %v159, %v166
    %v169 = vadd.f32 %v160, %v166
    %v170 = vpack.c.bf16 %v169, %v168
    %v172 = vunpack.c.l.b16 %v170
    %v173 = vunpack.c.h.b16 %v170
    %v174 = vpack.c.b16 %v172, %v172
    %v175 = vpack.c.b16 %v173, %v173
    %vm178 = vcmask 257024
    %179 = vst.msk [vmem:[%s6] sm:$0xf] %vm178, %v174
    %180 = vst.msk [vmem:[%s6 + $0x4] sm:$0xf] %vm178, %v175
  $region33: #{encoder_bert_forward.15} parent=0 // pred_fallthru
    _
  // Predicated region
  $region34: #{encoder_bert_forward.15} parent=0 // pred_check
    _
  $region35: #{encoder_bert_forward.15} parent=0 // pred_check_branch
    %182 = sbr.rel (0) target = $region37
  $region36: #{encoder_bert_forward.15} parent=0 // pred_region
    _
  $region37: #{encoder_bert_forward.15} parent=0 // pred_fallthru
    _
  // Predicated region
  $region38: #{encoder_bert_forward.15} parent=0 // pred_check
    _
  $region39: #{encoder_bert_forward.15} parent=0 // pred_check_branch
    %184 = sbr.rel (0) target = $region41
  $region40: #{encoder_bert_forward.15} parent=0 // pred_region
    _
  $region41: #{encoder_bert_forward.15} parent=0 // pred_fallthru
    _

// kernel: encoder_bert_forward.14
$region0: #{encoder_bert_forward.14}
  #allocation0 [shape = 'u32[]', space=smem, size = 0x4, offset = 0x4, fixed_abs, tag = 'smem constant byte address 0x4 - core index']
  #allocation1 [shape = 'u32[144,128]{1,0:T(1,128)}', space=vmem, size = 0x12000, scoped, tag = 'internal scratch']
  %s0 = inlined_call_operand.vmem [shape: bf16[2,8,32], index: 0, kind: input, shape index: {}]
  %s1 = inlined_call_operand.vmem [shape: bf16[2,8,32], index: 1, kind: input, shape index: {}]
  %s2 = inlined_call_operand.vmem [shape: bf16[2,8,32], index: 2, kind: input, shape index: {}]
  %s3 = inlined_call_operand.vmem [shape: f32[2,1,8], index: 3, kind: input, shape index: {}]
  %s4 = inlined_call_operand.vmem [shape: bf16[2,8,32], index: 4, kind: output, shape index: {}]
  %s5 = sld [smem:[#allocation0]]
  $region49: #{encoder_bert_forward.14} parent=0
    _
  %s7 = ssub.s32 1, %s5
  %s8 = scalar_select 0, %s7, %s5
  loop: start=0, step=1, limit=4
  $region2: #{encoder_bert_forward.14} parent=0 // loop_pre_header
    _
  $region3: #{encoder_bert_forward.14} parent=0 // loop_header
    %s10 = sphi 0, %s14
    %p11 = scmp.ge.s32.totalorder %s10, 4
    %s20 = sphi 0, %s22
    %s23 = sphi 0, %s20
    %s24 = sphi 0, %s23
    %s40 = sphi 0, %s24
    %s46 = sphi 0, %s48
    %s49 = sphi 0, %s46
    %s50 = sphi 0, %s49
    %s66 = sphi 0, %s50
    %s72 = sphi 0, %s74
    %s75 = sphi 0, %s72
    %s76 = sphi 0, %s75
    %s92 = sphi 0, %s76
    %s98 = sphi 0, %s100
    %s101 = sphi 0, %s98
    %s102 = sphi 0, %s101
    %s118 = sphi 0, %s102
    %s124 = sphi 0, %s126
    %s127 = sphi 0, %s124
    %s128 = sphi 0, %s127
    %s144 = sphi 0, %s128
  $region4: #{encoder_bert_forward.14} parent=0 // loop_header_branch
    %13 = sbr.rel (%p11) target = $region8
  $region5: #{encoder_bert_forward.14} parent=0 // loop_body
    %s15 = ssub.s32 %s10, 1
    %s16 = ssub.s32 %s10, 2
    %s17 = sadd.s32 %s10, 1
    %s18 = ssub.s32 %s10, %s17
    %p19 = scmp.eq.s32.totalorder %s18, 0
    %s21 = sadd.s32 %s20, 1
    %s22 = scalar_select %p19, %s20, %s21
    %p25 = pneg %p19
    %p26 = scmp.eq.s32.totalorder %s10, 1
    %p27 = por %p25, %p26
    %p28 = scmp.ne.s32.totalorder %s20, %s23
    %p29 = scmp.eq.s32.totalorder %s10, 0
    %p30 = por %p28, %p29
    %p31 = scmp.ne.s32.totalorder %s20, %s23
    %p32 = scmp.eq.s32.totalorder %s15, 1
    %p33 = por %p31, %p32
    %p34 = scmp.ne.s32.totalorder %s23, %s24
    %p35 = scmp.eq.s32.totalorder %s15, 0
    %p36 = por %p34, %p35
    %p37 = scmp.ne.s32.totalorder %s23, %s24
    %p38 = scmp.eq.s32.totalorder %s16, 1
    %p39 = por %p37, %p38
    %p41 = scmp.ne.s32.totalorder %s24, %s40
    %p42 = scmp.eq.s32.totalorder %s16, 0
    %p43 = por %p41, %p42
    %s44 = ssub.s32 %s10, %s17
    %p45 = scmp.eq.s32.totalorder %s44, 0
    %s47 = sadd.s32 %s46, 1
    %s48 = scalar_select %p45, %s46, %s47
    %p51 = pneg %p45
    %p52 = scmp.eq.s32.totalorder %s10, 1
    %p53 = por %p51, %p52
    %p54 = scmp.ne.s32.totalorder %s46, %s49
    %p55 = scmp.eq.s32.totalorder %s10, 0
    %p56 = por %p54, %p55
    %p57 = scmp.ne.s32.totalorder %s46, %s49
    %p58 = scmp.eq.s32.totalorder %s15, 1
    %p59 = por %p57, %p58
    %p60 = scmp.ne.s32.totalorder %s49, %s50
    %p61 = scmp.eq.s32.totalorder %s15, 0
    %p62 = por %p60, %p61
    %p63 = scmp.ne.s32.totalorder %s49, %s50
    %p64 = scmp.eq.s32.totalorder %s16, 1
    %p65 = por %p63, %p64
    %p67 = scmp.ne.s32.totalorder %s50, %s66
    %p68 = scmp.eq.s32.totalorder %s16, 0
    %p69 = por %p67, %p68
    %s70 = ssub.s32 %s10, %s17
    %p71 = scmp.eq.s32.totalorder %s70, 0
    %s73 = sadd.s32 %s72, 1
    %s74 = scalar_select %p71, %s72, %s73
    %p77 = pneg %p71
    %p78 = scmp.eq.s32.totalorder %s10, 1
    %p79 = por %p77, %p78
    %p80 = scmp.ne.s32.totalorder %s72, %s75
    %p81 = scmp.eq.s32.totalorder %s10, 0
    %p82 = por %p80, %p81
    %p83 = scmp.ne.s32.totalorder %s72, %s75
    %p84 = scmp.eq.s32.totalorder %s15, 1
    %p85 = por %p83, %p84
    %p86 = scmp.ne.s32.totalorder %s75, %s76
    %p87 = scmp.eq.s32.totalorder %s15, 0
    %p88 = por %p86, %p87
    %p89 = scmp.ne.s32.totalorder %s75, %s76
    %p90 = scmp.eq.s32.totalorder %s16, 1
    %p91 = por %p89, %p90
    %p93 = scmp.ne.s32.totalorder %s76, %s92
    %p94 = scmp.eq.s32.totalorder %s16, 0
    %p95 = por %p93, %p94
    %s96 = ssub.s32 %s10, %s17
    %p97 = scmp.eq.s32.totalorder %s96, 0
    %s99 = sadd.s32 %s98, 1
    %s100 = scalar_select %p97, %s98, %s99
    %p103 = pneg %p97
    %p104 = scmp.eq.s32.totalorder %s10, 1
    %p105 = por %p103, %p104
    %p106 = scmp.ne.s32.totalorder %s98, %s101
    %p107 = scmp.eq.s32.totalorder %s10, 0
    %p108 = por %p106, %p107
    %p109 = scmp.ne.s32.totalorder %s98, %s101
    %p110 = scmp.eq.s32.totalorder %s15, 1
    %p111 = por %p109, %p110
    %p112 = scmp.ne.s32.totalorder %s101, %s102
    %p113 = scmp.eq.s32.totalorder %s15, 0
    %p114 = por %p112, %p113
    %p115 = scmp.ne.s32.totalorder %s101, %s102
    %p116 = scmp.eq.s32.totalorder %s16, 1
    %p117 = por %p115, %p116
    %p119 = scmp.ne.s32.totalorder %s102, %s118
    %p120 = scmp.eq.s32.totalorder %s16, 0
    %p121 = por %p119, %p120
    %s122 = ssub.s32 %s10, %s17
    %p123 = scmp.eq.s32.totalorder %s122, 0
    %s125 = sadd.s32 %s124, 1
    %s126 = scalar_select %p123, %s124, %s125
    %p129 = pneg %p123
    %p130 = scmp.eq.s32.totalorder %s10, 1
    %p131 = por %p129, %p130
    %p132 = scmp.ne.s32.totalorder %s124, %s127
    %p133 = scmp.eq.s32.totalorder %s10, 0
    %p134 = por %p132, %p133
    %p135 = scmp.ne.s32.totalorder %s124, %s127
    %p136 = scmp.eq.s32.totalorder %s15, 1
    %p137 = por %p135, %p136
    %p138 = scmp.ne.s32.totalorder %s127, %s128
    %p139 = scmp.eq.s32.totalorder %s15, 0
    %p140 = por %p138, %p139
    %p141 = scmp.ne.s32.totalorder %s127, %s128
    %p142 = scmp.eq.s32.totalorder %s16, 1
    %p143 = por %p141, %p142
    %p145 = scmp.ne.s32.totalorder %s128, %s144
    %p146 = scmp.eq.s32.totalorder %s16, 0
    %p147 = por %p145, %p146
    %p148 = scmp.le.s32.totalorder 1, %s10
    %p149 = scmp.lt.s32.totalorder %s10, 3
    %p150 = pnand %p148, %p149
    %p151 = pneg %p150
    // Predicated region
    $region9: #{encoder_bert_forward.14} parent=5 // pred_check
      _
    $region10: #{encoder_bert_forward.14} parent=5 // pred_check_branch
      %153 = sbr.rel (%p150) target = $region12
    $region11: #{encoder_bert_forward.14} parent=5 // pred_region
      %s154 = ssub.s32 %s10, 1
    $region12: #{encoder_bert_forward.14} parent=5 // pred_fallthru
      _
    %p155 = scmp.lt.s32.totalorder %s10, 2
    // Predicated region
    $region13: #{encoder_bert_forward.14} parent=5 // pred_check
      %p156 = pneg %p155
    $region14: #{encoder_bert_forward.14} parent=5 // pred_check_branch
      %158 = sbr.rel (%p156) target = $region16
    $region15: #{encoder_bert_forward.14} parent=5 // pred_region
      // Predicated region
      $region17: #{encoder_bert_forward.14} parent=15 // pred_check
        %p159 = pneg %p30
      $region18: #{encoder_bert_forward.14} parent=15 // pred_check_branch
        %161 = sbr.rel (%p159) target = $region20
      $region19: #{encoder_bert_forward.14} parent=15 // pred_region
        %p162 = scmp.lt.s32.totalorder %s10, 1
        %s163 = scalar_select %p162, %s10, 1
        %s164 = smul.addr %s163, 4
        %s165 = scalar_lea.vmem %s0, %s164
      $region20: #{encoder_bert_forward.14} parent=15 // pred_fallthru
        _
      // Predicated region
      $region21: #{encoder_bert_forward.14} parent=15 // pred_check
        %p166 = pneg %p56
      $region22: #{encoder_bert_forward.14} parent=15 // pred_check_branch
        %168 = sbr.rel (%p166) target = $region24
      $region23: #{encoder_bert_forward.14} parent=15 // pred_region
        %p169 = scmp.lt.s32.totalorder %s10, 1
        %s170 = scalar_select %p169, %s10, 1
        %s171 = smul.addr %s170, 4
        %s172 = scalar_lea.vmem %s1, %s171
      $region24: #{encoder_bert_forward.14} parent=15 // pred_fallthru
        _
      // Predicated region
      $region25: #{encoder_bert_forward.14} parent=15 // pred_check
        %p173 = pneg %p82
      $region26: #{encoder_bert_forward.14} parent=15 // pred_check_branch
        %175 = sbr.rel (%p173) target = $region28
      $region27: #{encoder_bert_forward.14} parent=15 // pred_region
        %p176 = scmp.lt.s32.totalorder %s10, 1
        %s177 = scalar_select %p176, %s10, 1
        %s178 = smul.addr %s177, 4
        %s179 = scalar_lea.vmem %s2, %s178
      $region28: #{encoder_bert_forward.14} parent=15 // pred_fallthru
        _
      // Predicated region
      $region29: #{encoder_bert_forward.14} parent=15 // pred_check
        %p180 = pneg %p108
      $region30: #{encoder_bert_forward.14} parent=15 // pred_check_branch
        %182 = sbr.rel (%p180) target = $region32
      $region31: #{encoder_bert_forward.14} parent=15 // pred_region
        %p183 = scmp.lt.s32.totalorder %s10, 1
        %s184 = scalar_select %p183, %s10, 1
        %s185 = scalar_lea.vmem %s3, %s184
      $region32: #{encoder_bert_forward.14} parent=15 // pred_fallthru
        _
    $region16: #{encoder_bert_forward.14} parent=5 // pred_fallthru
      _
    %p186 = scmp.le.s32.totalorder 1, %s10
    %p187 = scmp.lt.s32.totalorder %s10, 3
    %p188 = pnand %p186, %p187
    %p189 = pneg %p188
    // Predicated region
    $region33: #{encoder_bert_forward.14} parent=5 // pred_check
      _
    $region34: #{encoder_bert_forward.14} parent=5 // pred_check_branch
      %191 = sbr.rel (%p188) target = $region36
    $region35: #{encoder_bert_forward.14} parent=5 // pred_region
      %s192 = ssub.s32 %s10, 1
      %p193 = scmp.lt.s32.totalorder %s15, 1
      %s194 = scalar_select %p193, %s15, 1
      %s195 = smul.addr %s194, 4
      %s196 = scalar_lea.vmem %s0, %s195
      %p197 = pneg %p36
      %p198 = pneg %p33
      %p199 = scmp.lt.s32.totalorder %s15, 1
      %s200 = scalar_select %p199, %s15, 1
      %s201 = smul.addr %s200, 4
      %s202 = scalar_lea.vmem %s1, %s201
      %p203 = pneg %p62
      %p204 = pneg %p59
      %p205 = scmp.lt.s32.totalorder %s15, 1
      %s206 = scalar_select %p205, %s15, 1
      %s207 = smul.addr %s206, 4
      %s208 = scalar_lea.vmem %s2, %s207
      %p209 = pneg %p88
      %p210 = pneg %p85
      %p211 = scmp.lt.s32.totalorder %s15, 1
      %s212 = scalar_select %p211, %s15, 1
      %s213 = scalar_lea.vmem %s3, %s212
      %p214 = pneg %p114
      %p215 = pneg %p111
      %p216 = pneg %p140
      %p217 = pneg %p137
      %p218 = scmp.lt.s32.totalorder %s15, 1
      %s219 = scalar_select %p218, %s15, 1
      %s220 = smul.addr %s219, 4
      %s221 = scalar_lea.vmem %s4, %s220
      %p222 = scmp.lt.s32.totalorder %s15, 1
      %s223 = scalar_select %p222, %s15, 1
      %s224 = smul.addr %s223, 4
      %s225 = scalar_lea.vmem %s0, %s224
      %p226 = scmp.lt.s32.totalorder %s15, 1
      %s227 = scalar_select %p226, %s15, 1
      %s228 = smul.addr %s227, 4
      %s229 = scalar_lea.vmem %s1, %s228
      %p230 = scmp.lt.s32.totalorder %s15, 1
      %s231 = scalar_select %p230, %s15, 1
      %s232 = smul.addr %s231, 4
      %s233 = scalar_lea.vmem %s2, %s232
      %p234 = scmp.lt.s32.totalorder %s15, 1
      %s235 = scalar_select %p234, %s15, 1
      %s236 = scalar_lea.vmem %s3, %s235
      %p237 = scmp.lt.s32.totalorder %s15, 1
      %s238 = scalar_select %p237, %s15, 1
      %s239 = smul.addr %s238, 4
      %s240 = scalar_lea.vmem %s4, %s239
      %v242 = vld [vmem:[%s225] sm:$0xf]
      %v243 = vld [vmem:[%s229] sm:$0xf]
      %v244 = vld [vmem:[%s233] sm:$0xf]
      %v245 = vld [vmem:[%s236] sm:$0x1]
      %vm246 = vcmask 64512
      %v248 = vsel %vm246, %v242, 0
      %v251 = vsel %vm246, %v243, 0
      %253 = vmatprep.subr.bf16.mxu0 0
      %254 = vmatpush1.bf16.xpose.msra.mxu0 %v251
      %255 = vmatprep.subr.bf16.mxu0 0
      %256 = vmatpush1.bf16.xpose.msra.mxu0 0
      %257 = vmatprep.subr.bf16.mxu0 0
      %258 = vmatpush1.bf16.xpose.msra.mxu0 0
      %259 = vmatprep.subr.bf16.mxu0 0
      %260 = vmatpush1.bf16.xpose.msra.mxu0 0
      %261 = vmatprep.subr.bf16.mxu0 0
      %262 = vmatpush1.bf16.xpose.msra.mxu0 0
      %263 = vmatprep.subr.bf16.mxu0 0
      %264 = vmatpush1.bf16.xpose.msra.mxu0 0
      %265 = vmatprep.subr.bf16.mxu0 0
      %266 = vmatpush1.bf16.xpose.msra.mxu0 0
      %267 = vmatprep.subr.bf16.mxu0 0
      %268 = vmatpush1.bf16.xpose.msra.mxu0 0
      %269 = vmatprep.subr.bf16.mxu0 0
      %270 = vmatpush1.bf16.xpose.msra.mxu0 0
      %271 = vmatprep.subr.bf16.mxu0 0
      %272 = vmatpush1.bf16.xpose.msra.mxu0 0
      %273 = vmatprep.subr.bf16.mxu0 0
      %274 = vmatpush1.bf16.xpose.msra.mxu0 0
      %275 = vmatprep.subr.bf16.mxu0 0
      %276 = vmatpush1.bf16.xpose.msra.mxu0 0
      %277 = vmatprep.subr.bf16.mxu0 0
      %278 = vmatpush1.bf16.xpose.msra.mxu0 0
      %279 = vmatprep.subr.bf16.mxu0 0
      %280 = vmatpush1.bf16.xpose.msra.mxu0 0
      %281 = vmatprep.subr.bf16.mxu0 0
      %282 = vmatpush1.bf16.xpose.msra.mxu0 0
      %283 = vmatprep.subr.bf16.mxu0 0
      %284 = vmatpush1.bf16.xpose.msra.mxu0 0
      %285 = vmatprep.mubr.bf16.mxu0 0
      %286 = vmatmul.mubr.bf16.gmra.mrb[0].mxu0 %v248
      %v287 = vpop.f32.mrb[0].mxu0
      %v288 = vadd.f32 0.0, %v287
      %v289 = vpop.f32.mrb[0].mxu0
      %v290 = vpop.f32.mrb[0].mxu0
      %v291 = vpop.f32.mrb[0].mxu0
      %292 = vdwg.mxu0
      %v293 = vmul.f32 %v288, 0.35355338
      %v295 = vlaneseq
      %v296 = vshrl.u32 %v295, 7
      %v297 = vsub.s32 0, %v296
      %v298 = vrot.slane %v245, %v297
      %v300 = vadd.f32 %v293, %v298
      %v301 = vsel %vm246, %v300, -inf
      %302 = vmax.xlane.f32.xlu0 %v301
      %v303 = vpop.xlane.xlu0 %302
      %v304 = vsub.f32 %v300, %v303
      %v305 = vmul.f32 %v304, 1.442695
      %v306 = vpow.pop %v305
      %v307 = vsel %vm246, %v306, 0.0
      %308 = vadd.xlane.f32.xlu0 %v307
      %v309 = vpop.xlane.xlu0 %308
      %v310 = vrcp.pop %v309
      %v311 = vmul.f32 %v306, %v310
      %v312 = vpack.c.bf16 %v311, %v311
      %v314 = vsel %vm246, %v312, 0
      %vm316 = vcmask 1043456
      %v318 = vsel %vm316, %v244, 0
      %320 = vmatprep.subr.bf16.mxu0 0
      %321 = vmatpush1.bf16.msra.mxu0 %v318
      %322 = vmatprep.subr.bf16.mxu0 0
      %323 = vmatpush1.bf16.msra.mxu0 0
      %324 = vmatprep.subr.bf16.mxu0 0
      %325 = vmatpush1.bf16.msra.mxu0 0
      %326 = vmatprep.subr.bf16.mxu0 0
      %327 = vmatpush1.bf16.msra.mxu0 0
      %328 = vmatprep.subr.bf16.mxu0 0
      %329 = vmatpush1.bf16.msra.mxu0 0
      %330 = vmatprep.subr.bf16.mxu0 0
      %331 = vmatpush1.bf16.msra.mxu0 0
      %332 = vmatprep.subr.bf16.mxu0 0
      %333 = vmatpush1.bf16.msra.mxu0 0
      %334 = vmatprep.subr.bf16.mxu0 0
      %335 = vmatpush1.bf16.msra.mxu0 0
      %336 = vmatprep.subr.bf16.mxu0 0
      %337 = vmatpush1.bf16.msra.mxu0 0
      %338 = vmatprep.subr.bf16.mxu0 0
      %339 = vmatpush1.bf16.msra.mxu0 0
      %340 = vmatprep.subr.bf16.mxu0 0
      %341 = vmatpush1.bf16.msra.mxu0 0
      %342 = vmatprep.subr.bf16.mxu0 0
      %343 = vmatpush1.bf16.msra.mxu0 0
      %344 = vmatprep.subr.bf16.mxu0 0
      %345 = vmatpush1.bf16.msra.mxu0 0
      %346 = vmatprep.subr.bf16.mxu0 0
      %347 = vmatpush1.bf16.msra.mxu0 0
      %348 = vmatprep.subr.bf16.mxu0 0
      %349 = vmatpush1.bf16.msra.mxu0 0
      %350 = vmatprep.subr.bf16.mxu0 0
      %351 = vmatpush1.bf16.msra.mxu0 0
      %352 = vmatprep.mubr.bf16.mxu0 0
      %353 = vmatmul.mubr.bf16.gmra.mrb[0].mxu0 %v314
      %v354 = vpop.f32.mrb[0].mxu0
      %v355 = vadd.f32 0.0, %v354
      %v356 = vpop.f32.mrb[0].mxu0
      %v357 = vpop.f32.mrb[0].mxu0
      %v358 = vpop.f32.mrb[0].mxu0
      %359 = vdwg.mxu0
      %v361 = vunpack.c.l.b16 %v242
      %v362 = vpack.c.b16 %v361, %v361
      %363 = vrot.lane.b32.xlu0 %v362, 120
      %v364 = vpop.permute.xlu0 %363
      %v366 = vunpack.c.l.b16 %v243
      %v367 = vpack.c.b16 %v366, %v366
      %368 = vrot.lane.b32.xlu0 %v367, 120
      %v369 = vpop.permute.xlu0 %368
      %v371 = vsel %vm246, %v364, 0
      %v374 = vsel %vm246, %v369, 0
      %376 = vmatprep.subr.bf16.mxu0 0
      %377 = vmatpush1.bf16.xpose.msra.mxu0 %v374
      %378 = vmatprep.subr.bf16.mxu0 0
      %379 = vmatpush1.bf16.xpose.msra.mxu0 0
      %380 = vmatprep.subr.bf16.mxu0 0
      %381 = vmatpush1.bf16.xpose.msra.mxu0 0
      %382 = vmatprep.subr.bf16.mxu0 0
      %383 = vmatpush1.bf16.xpose.msra.mxu0 0
      %384 = vmatprep.subr.bf16.mxu0 0
      %385 = vmatpush1.bf16.xpose.msra.mxu0 0
      %386 = vmatprep.subr.bf16.mxu0 0
      %387 = vmatpush1.bf16.xpose.msra.mxu0 0
      %388 = vmatprep.subr.bf16.mxu0 0
      %389 = vmatpush1.bf16.xpose.msra.mxu0 0
      %390 = vmatprep.subr.bf16.mxu0 0
      %391 = vmatpush1.bf16.xpose.msra.mxu0 0
      %392 = vmatprep.subr.bf16.mxu0 0
      %393 = vmatpush1.bf16.xpose.msra.mxu0 0
      %394 = vmatprep.subr.bf16.mxu0 0
      %395 = vmatpush1.bf16.xpose.msra.mxu0 0
      %396 = vmatprep.subr.bf16.mxu0 0
      %397 = vmatpush1.bf16.xpose.msra.mxu0 0
      %398 = vmatprep.subr.bf16.mxu0 0
      %399 = vmatpush1.bf16.xpose.msra.mxu0 0
      %400 = vmatprep.subr.bf16.mxu0 0
      %401 = vmatpush1.bf16.xpose.msra.mxu0 0
      %402 = vmatprep.subr.bf16.mxu0 0
      %403 = vmatpush1.bf16.xpose.msra.mxu0 0
      %404 = vmatprep.subr.bf16.mxu0 0
      %405 = vmatpush1.bf16.xpose.msra.mxu0 0
      %406 = vmatprep.subr.bf16.mxu0 0
      %407 = vmatpush1.bf16.xpose.msra.mxu0 0
      %408 = vmatprep.mubr.bf16.mxu0 0
      %409 = vmatmul.mubr.bf16.gmra.mrb[0].mxu0 %v371
      %v410 = vpop.f32.mrb[0].mxu0
      %v411 = vadd.f32 0.0, %v410
      %v412 = vpop.f32.mrb[0].mxu0
      %v413 = vpop.f32.mrb[0].mxu0
      %v414 = vpop.f32.mrb[0].mxu0
      %415 = vdwg.mxu0
      %v416 = vmul.f32 %v411, 0.35355338
      %v417 = vadd.f32 %v416, %v298
      %v418 = vsel %vm246, %v417, -inf
      %419 = vmax.xlane.f32.xlu0 %v418
      %v420 = vpop.xlane.xlu0 %419
      %v421 = vsub.f32 %v417, %v420
      %v422 = vmul.f32 %v421, 1.442695
      %v423 = vpow.pop %v422
      %v424 = vsel %vm246, %v423, 0.0
      %425 = vadd.xlane.f32.xlu0 %v424
      %v426 = vpop.xlane.xlu0 %425
      %v427 = vrcp.pop %v426
      %v428 = vmul.f32 %v423, %v427
      %v429 = vpack.c.bf16 %v428, %v428
      %v431 = vunpack.c.l.b16 %v244
      %v432 = vpack.c.b16 %v431, %v431
      %433 = vrot.lane.b32.xlu0 %v432, 120
      %v434 = vpop.permute.xlu0 %433
      %v436 = vsel %vm246, %v429, 0
      %v439 = vsel %vm316, %v434, 0
      %441 = vmatprep.subr.bf16.mxu0 0
      %442 = vmatpush1.bf16.msra.mxu0 %v439
      %443 = vmatprep.subr.bf16.mxu0 0
      %444 = vmatpush1.bf16.msra.mxu0 0
      %445 = vmatprep.subr.bf16.mxu0 0
      %446 = vmatpush1.bf16.msra.mxu0 0
      %447 = vmatprep.subr.bf16.mxu0 0
      %448 = vmatpush1.bf16.msra.mxu0 0
      %449 = vmatprep.subr.bf16.mxu0 0
      %450 = vmatpush1.bf16.msra.mxu0 0
      %451 = vmatprep.subr.bf16.mxu0 0
      %452 = vmatpush1.bf16.msra.mxu0 0
      %453 = vmatprep.subr.bf16.mxu0 0
      %454 = vmatpush1.bf16.msra.mxu0 0
      %455 = vmatprep.subr.bf16.mxu0 0
      %456 = vmatpush1.bf16.msra.mxu0 0
      %457 = vmatprep.subr.bf16.mxu0 0
      %458 = vmatpush1.bf16.msra.mxu0 0
      %459 = vmatprep.subr.bf16.mxu0 0
      %460 = vmatpush1.bf16.msra.mxu0 0
      %461 = vmatprep.subr.bf16.mxu0 0
      %462 = vmatpush1.bf16.msra.mxu0 0
      %463 = vmatprep.subr.bf16.mxu0 0
      %464 = vmatpush1.bf16.msra.mxu0 0
      %465 = vmatprep.subr.bf16.mxu0 0
      %466 = vmatpush1.bf16.msra.mxu0 0
      %467 = vmatprep.subr.bf16.mxu0 0
      %468 = vmatpush1.bf16.msra.mxu0 0
      %469 = vmatprep.subr.bf16.mxu0 0
      %470 = vmatpush1.bf16.msra.mxu0 0
      %471 = vmatprep.subr.bf16.mxu0 0
      %472 = vmatpush1.bf16.msra.mxu0 0
      %473 = vmatprep.mubr.bf16.mxu0 0
      %474 = vmatmul.mubr.bf16.gmra.mrb[0].mxu0 %v436
      %v475 = vpop.f32.mrb[0].mxu0
      %v476 = vadd.f32 0.0, %v475
      %v477 = vpop.f32.mrb[0].mxu0
      %v478 = vpop.f32.mrb[0].mxu0
      %v479 = vpop.f32.mrb[0].mxu0
      %480 = vdwg.mxu0
      %481 = vrot.lane.b32.xlu0 %v362, 112
      %v482 = vpop.permute.xlu0 %481
      %483 = vrot.lane.b32.xlu0 %v367, 112
      %v484 = vpop.permute.xlu0 %483
      %v486 = vsel %vm246, %v482, 0
      %v489 = vsel %vm246, %v484, 0
      %491 = vmatprep.subr.bf16.mxu0 0
      %492 = vmatpush1.bf16.xpose.msra.mxu0 %v489
      %493 = vmatprep.subr.bf16.mxu0 0
      %494 = vmatpush1.bf16.xpose.msra.mxu0 0
      %495 = vmatprep.subr.bf16.mxu0 0
      %496 = vmatpush1.bf16.xpose.msra.mxu0 0
      %497 = vmatprep.subr.bf16.mxu0 0
      %498 = vmatpush1.bf16.xpose.msra.mxu0 0
      %499 = vmatprep.subr.bf16.mxu0 0
      %500 = vmatpush1.bf16.xpose.msra.mxu0 0
      %501 = vmatprep.subr.bf16.mxu0 0
      %502 = vmatpush1.bf16.xpose.msra.mxu0 0
      %503 = vmatprep.subr.bf16.mxu0 0
      %504 = vmatpush1.bf16.xpose.msra.mxu0 0
      %505 = vmatprep.subr.bf16.mxu0 0
      %506 = vmatpush1.bf16.xpose.msra.mxu0 0
      %507 = vmatprep.subr.bf16.mxu0 0
      %508 = vmatpush1.bf16.xpose.msra.mxu0 0
      %509 = vmatprep.subr.bf16.mxu0 0
      %510 = vmatpush1.bf16.xpose.msra.mxu0 0
      %511 = vmatprep.subr.bf16.mxu0 0
      %512 = vmatpush1.bf16.xpose.msra.mxu0 0
      %513 = vmatprep.subr.bf16.mxu0 0
      %514 = vmatpush1.bf16.xpose.msra.mxu0 0
      %515 = vmatprep.subr.bf16.mxu0 0
      %516 = vmatpush1.bf16.xpose.msra.mxu0 0
      %517 = vmatprep.subr.bf16.mxu0 0
      %518 = vmatpush1.bf16.xpose.msra.mxu0 0
      %519 = vmatprep.subr.bf16.mxu0 0
      %520 = vmatpush1.bf16.xpose.msra.mxu0 0
      %521 = vmatprep.subr.bf16.mxu0 0
      %522 = vmatpush1.bf16.xpose.msra.mxu0 0
      %523 = vmatprep.mubr.bf16.mxu0 0
      %524 = vmatmul.mubr.bf16.gmra.mrb[0].mxu0 %v486
      %v525 = vpop.f32.mrb[0].mxu0
      %v526 = vadd.f32 0.0, %v525
      %v527 = vpop.f32.mrb[0].mxu0
      %v528 = vpop.f32.mrb[0].mxu0
      %v529 = vpop.f32.mrb[0].mxu0
      %530 = vdwg.mxu0
      %v531 = vmul.f32 %v526, 0.35355338
      %v532 = vadd.f32 %v531, %v298
      %v533 = vsel %vm246, %v532, -inf
      %534 = vmax.xlane.f32.xlu0 %v533
      %v535 = vpop.xlane.xlu0 %534
      %v536 = vsub.f32 %v532, %v535
      %v537 = vmul.f32 %v536, 1.442695
      %v538 = vpow.pop %v537
      %v539 = vsel %vm246, %v538, 0.0
      %540 = vadd.xlane.f32.xlu0 %v539
      %v541 = vpop.xlane.xlu0 %540
      %v542 = vrcp.pop %v541
      %v543 = vmul.f32 %v538, %v542
      %v544 = vpack.c.bf16 %v543, %v543
      %545 = vrot.lane.b32.xlu0 %v432, 112
      %v546 = vpop.permute.xlu0 %545
      %v548 = vsel %vm246, %v544, 0
      %v551 = vsel %vm316, %v546, 0
      %553 = vmatprep.subr.bf16.mxu0 0
      %554 = vmatpush1.bf16.msra.mxu0 %v551
      %555 = vmatprep.subr.bf16.mxu0 0
      %556 = vmatpush1.bf16.msra.mxu0 0
      %557 = vmatprep.subr.bf16.mxu0 0
      %558 = vmatpush1.bf16.msra.mxu0 0
      %559 = vmatprep.subr.bf16.mxu0 0
      %560 = vmatpush1.bf16.msra.mxu0 0
      %561 = vmatprep.subr.bf16.mxu0 0
      %562 = vmatpush1.bf16.msra.mxu0 0
      %563 = vmatprep.subr.bf16.mxu0 0
      %564 = vmatpush1.bf16.msra.mxu0 0
      %565 = vmatprep.subr.bf16.mxu0 0
      %566 = vmatpush1.bf16.msra.mxu0 0
      %567 = vmatprep.subr.bf16.mxu0 0
      %568 = vmatpush1.bf16.msra.mxu0 0
      %569 = vmatprep.subr.bf16.mxu0 0
      %570 = vmatpush1.bf16.msra.mxu0 0
      %571 = vmatprep.subr.bf16.mxu0 0
      %572 = vmatpush1.bf16.msra.mxu0 0
      %573 = vmatprep.subr.bf16.mxu0 0
      %574 = vmatpush1.bf16.msra.mxu0 0
      %575 = vmatprep.subr.bf16.mxu0 0
      %576 = vmatpush1.bf16.msra.mxu0 0
      %577 = vmatprep.subr.bf16.mxu0 0
      %578 = vmatpush1.bf16.msra.mxu0 0
      %579 = vmatprep.subr.bf16.mxu0 0
      %580 = vmatpush1.bf16.msra.mxu0 0
      %581 = vmatprep.subr.bf16.mxu0 0
      %582 = vmatpush1.bf16.msra.mxu0 0
      %583 = vmatprep.subr.bf16.mxu0 0
      %584 = vmatpush1.bf16.msra.mxu0 0
      %585 = vmatprep.mubr.bf16.mxu0 0
      %586 = vmatmul.mubr.bf16.gmra.mrb[0].mxu0 %v548
      %v587 = vpop.f32.mrb[0].mxu0
      %v588 = vadd.f32 0.0, %v587
      %v589 = vpop.f32.mrb[0].mxu0
      %v590 = vpop.f32.mrb[0].mxu0
      %v591 = vpop.f32.mrb[0].mxu0
      %592 = vdwg.mxu0
      %593 = vrot.lane.b32.xlu0 %v362, 104
      %v594 = vpop.permute.xlu0 %593
      %595 = vrot.lane.b32.xlu0 %v367, 104
      %v596 = vpop.permute.xlu0 %595
      %v598 = vsel %vm246, %v594, 0
      %v601 = vsel %vm246, %v596, 0
      %603 = vmatprep.subr.bf16.mxu0 0
      %604 = vmatpush1.bf16.xpose.msra.mxu0 %v601
      %605 = vmatprep.subr.bf16.mxu0 0
      %606 = vmatpush1.bf16.xpose.msra.mxu0 0
      %607 = vmatprep.subr.bf16.mxu0 0
      %608 = vmatpush1.bf16.xpose.msra.mxu0 0
      %609 = vmatprep.subr.bf16.mxu0 0
      %610 = vmatpush1.bf16.xpose.msra.mxu0 0
      %611 = vmatprep.subr.bf16.mxu0 0
      %612 = vmatpush1.bf16.xpose.msra.mxu0 0
      %613 = vmatprep.subr.bf16.mxu0 0
      %614 = vmatpush1.bf16.xpose.msra.mxu0 0
      %615 = vmatprep.subr.bf16.mxu0 0
      %616 = vmatpush1.bf16.xpose.msra.mxu0 0
      %617 = vmatprep.subr.bf16.mxu0 0
      %618 = vmatpush1.bf16.xpose.msra.mxu0 0
      %619 = vmatprep.subr.bf16.mxu0 0
      %620 = vmatpush1.bf16.xpose.msra.mxu0 0
      %621 = vmatprep.subr.bf16.mxu0 0
      %622 = vmatpush1.bf16.xpose.msra.mxu0 0
      %623 = vmatprep.subr.bf16.mxu0 0
      %624 = vmatpush1.bf16.xpose.msra.mxu0 0
      %625 = vmatprep.subr.bf16.mxu0 0
      %626 = vmatpush1.bf16.xpose.msra.mxu0 0
      %627 = vmatprep.subr.bf16.mxu0 0
      %628 = vmatpush1.bf16.xpose.msra.mxu0 0
      %629 = vmatprep.subr.bf16.mxu0 0
      %630 = vmatpush1.bf16.xpose.msra.mxu0 0
      %631 = vmatprep.subr.bf16.mxu0 0
      %632 = vmatpush1.bf16.xpose.msra.mxu0 0
      %633 = vmatprep.subr.bf16.mxu0 0
      %634 = vmatpush1.bf16.xpose.msra.mxu0 0
      %635 = vmatprep.mubr.bf16.mxu0 0
      %636 = vmatmul.mubr.bf16.gmra.mrb[0].mxu0 %v598
      %v637 = vpop.f32.mrb[0].mxu0
      %v638 = vadd.f32 0.0, %v637
      %v639 = vpop.f32.mrb[0].mxu0
      %v640 = vpop.f32.mrb[0].mxu0
      %v641 = vpop.f32.mrb[0].mxu0
      %642 = vdwg.mxu0
      %v643 = vmul.f32 %v638, 0.35355338
      %v644 = vadd.f32 %v643, %v298
      %v645 = vsel %vm246, %v644, -inf
      %646 = vmax.xlane.f32.xlu0 %v645
      %v647 = vpop.xlane.xlu0 %646
      %v648 = vsub.f32 %v644, %v647
      %v649 = vmul.f32 %v648, 1.442695
      %v650 = vpow.pop %v649
      %v651 = vsel %vm246, %v650, 0.0
      %652 = vadd.xlane.f32.xlu0 %v651
      %v653 = vpop.xlane.xlu0 %652
      %v654 = vrcp.pop %v653
      %v655 = vmul.f32 %v650, %v654
      %v656 = vpack.c.bf16 %v655, %v655
      %657 = vrot.lane.b32.xlu0 %v432, 104
      %v658 = vpop.permute.xlu0 %657
      %v660 = vsel %vm246, %v656, 0
      %v663 = vsel %vm316, %v658, 0
      %665 = vmatprep.subr.bf16.mxu0 0
      %666 = vmatpush1.bf16.msra.mxu0 %v663
      %667 = vmatprep.subr.bf16.mxu0 0
      %668 = vmatpush1.bf16.msra.mxu0 0
      %669 = vmatprep.subr.bf16.mxu0 0
      %670 = vmatpush1.bf16.msra.mxu0 0
      %671 = vmatprep.subr.bf16.mxu0 0
      %672 = vmatpush1.bf16.msra.mxu0 0
      %673 = vmatprep.subr.bf16.mxu0 0
      %674 = vmatpush1.bf16.msra.mxu0 0
      %675 = vmatprep.subr.bf16.mxu0 0
      %676 = vmatpush1.bf16.msra.mxu0 0
      %677 = vmatprep.subr.bf16.mxu0 0
      %678 = vmatpush1.bf16.msra.mxu0 0
      %679 = vmatprep.subr.bf16.mxu0 0
      %680 = vmatpush1.bf16.msra.mxu0 0
      %681 = vmatprep.subr.bf16.mxu0 0
      %682 = vmatpush1.bf16.msra.mxu0 0
      %683 = vmatprep.subr.bf16.mxu0 0
      %684 = vmatpush1.bf16.msra.mxu0 0
      %685 = vmatprep.subr.bf16.mxu0 0
      %686 = vmatpush1.bf16.msra.mxu0 0
      %687 = vmatprep.subr.bf16.mxu0 0
      %688 = vmatpush1.bf16.msra.mxu0 0
      %689 = vmatprep.subr.bf16.mxu0 0
      %690 = vmatpush1.bf16.msra.mxu0 0
      %691 = vmatprep.subr.bf16.mxu0 0
      %692 = vmatpush1.bf16.msra.mxu0 0
      %693 = vmatprep.subr.bf16.mxu0 0
      %694 = vmatpush1.bf16.msra.mxu0 0
      %695 = vmatprep.subr.bf16.mxu0 0
      %696 = vmatpush1.bf16.msra.mxu0 0
      %697 = vmatprep.mubr.bf16.mxu0 0
      %698 = vmatmul.mubr.bf16.gmra.mrb[0].mxu0 %v660
      %v699 = vpop.f32.mrb[0].mxu0
      %v700 = vadd.f32 0.0, %v699
      %v701 = vpop.f32.mrb[0].mxu0
      %v702 = vpop.f32.mrb[0].mxu0
      %v703 = vpop.f32.mrb[0].mxu0
      %704 = vdwg.mxu0
      %706 = vrot.lane.b32.xlu0 %v476, 8
      %v707 = vpop.permute.xlu0 %706
      %710 = vrot.lane.b32.xlu0 %v588, 16
      %v711 = vpop.permute.xlu0 %710
      %714 = vrot.lane.b32.xlu0 %v700, 24
      %v715 = vpop.permute.xlu0 %714
      %v717 = vsel %vm246, %v355, %v707
      %vm718 = vcmask 130048
      %v719 = vsel %vm718, %v717, %v711
      %vm720 = vcmask 195584
      %v721 = vsel %vm720, %v719, %v715
      %v722 = vpack.c.bf16 %v721, %v721
      %vm723 = vcmask 257024
      %724 = vst.msk [vmem:[%s240] sm:$0xf] %vm723, %v722
      %p725 = scmp.lt.s32.totalorder %s15, 1
      %s726 = scalar_select %p725, %s15, 1
      %s727 = smul.addr %s726, 4
      %s728 = scalar_lea.vmem %s4, %s727
      // Predicated region
      $region37: #{encoder_bert_forward.14} parent=35 // pred_check
        %p729 = pneg %p137
      $region38: #{encoder_bert_forward.14} parent=35 // pred_check_branch
        %731 = sbr.rel (%p729) target = $region40
      $region39: #{encoder_bert_forward.14} parent=35 // pred_region
        _
      $region40: #{encoder_bert_forward.14} parent=35 // pred_fallthru
        _
    $region36: #{encoder_bert_forward.14} parent=5 // pred_fallthru
      _
    %p732 = scmp.le.s32.totalorder 2, %s10
    // Predicated region
    $region41: #{encoder_bert_forward.14} parent=5 // pred_check
      %p733 = pneg %p732
    $region42: #{encoder_bert_forward.14} parent=5 // pred_check_branch
      %735 = sbr.rel (%p733) target = $region44
    $region43: #{encoder_bert_forward.14} parent=5 // pred_region
      %s736 = ssub.s32 %s10, 2
      // Predicated region
      $region45: #{encoder_bert_forward.14} parent=43 // pred_check
        %p737 = pneg %p143
      $region46: #{encoder_bert_forward.14} parent=43 // pred_check_branch
        %739 = sbr.rel (%p737) target = $region48
      $region47: #{encoder_bert_forward.14} parent=43 // pred_region
        %p740 = scmp.lt.s32.totalorder %s16, 1
        %s741 = scalar_select %p740, %s16, 1
        %s742 = smul.addr %s741, 4
        %s743 = scalar_lea.vmem %s4, %s742
      $region48: #{encoder_bert_forward.14} parent=43 // pred_fallthru
        _
    $region44: #{encoder_bert_forward.14} parent=5 // pred_fallthru
      _
  $region6: #{encoder_bert_forward.14} parent=0 // loop_footer
    %s14 = sadd.s32 1, %s10
  $region7: #{encoder_bert_forward.14} parent=0 // loop_footer_branch
    %9 = sbr.rel target = $region3
  $region8: #{encoder_bert_forward.14} parent=0 // loop_exit
    _

// kernel: encoder_bert_forward.16
$region0: #{encoder_bert_forward.16}
  #allocation0 [shape = 'u32[]', space=smem, size = 0x4, offset = 0x4, fixed_abs, tag = 'smem constant byte address 0x4 - core index']
  #allocation1 [shape = 'u32[144,128]{1,0:T(1,128)}', space=vmem, size = 0x12000, scoped, tag = 'internal scratch']
  #allocation2 [shape = 'f32[16,64]{1,0:T(8,128)}', space=vmem, size = 0x2000, scoped, tag = 'scratch operand']
  %s0 = inlined_call_operand.vmem [shape: bf16[16,32], index: 0, kind: input, shape index: {}]
  %s1 = inlined_call_operand.vmem [shape: bf16[32,64], index: 1, kind: input, shape index: {}]
  %s2 = inlined_call_operand.vmem [shape: f32[1,64], index: 2, kind: input, shape index: {}]
  %s3 = inlined_call_operand.vmem [shape: bf16[16,64], index: 3, kind: output, shape index: {}]
  %s4 = sld [smem:[#allocation0]]
  $region30: #{encoder_bert_forward.16} parent=0
    _
  %s6 = ssub.s32 1, %s4
  %s7 = scalar_select 0, %s6, %s4
  // Predicated region
  $region2: #{encoder_bert_forward.16} parent=0 // pred_check
    _
  $region3: #{encoder_bert_forward.16} parent=0 // pred_check_branch
    %9 = sbr.rel (0) target = $region5
  $region4: #{encoder_bert_forward.16} parent=0 // pred_region
    _
  $region5: #{encoder_bert_forward.16} parent=0 // pred_fallthru
    _
  // Predicated region
  $region6: #{encoder_bert_forward.16} parent=0 // pred_check
    _
  $region7: #{encoder_bert_forward.16} parent=0 // pred_check_branch
    %11 = sbr.rel (0) target = $region9
  $region8: #{encoder_bert_forward.16} parent=0 // pred_region
    _
  $region9: #{encoder_bert_forward.16} parent=0 // pred_fallthru
    _
  // Predicated region
  $region10: #{encoder_bert_forward.16} parent=0 // pred_check
    _
  $region11: #{encoder_bert_forward.16} parent=0 // pred_check_branch
    %13 = sbr.rel (0) target = $region13
  $region12: #{encoder_bert_forward.16} parent=0 // pred_region
    _
  $region13: #{encoder_bert_forward.16} parent=0 // pred_fallthru
    _
  %p15 = scmp.eq.s32.totalorder 0, 0
  // Predicated region
  $region14: #{encoder_bert_forward.16} parent=0 // pred_check
    %p16 = pneg %p15
  $region15: #{encoder_bert_forward.16} parent=0 // pred_check_branch
    %18 = sbr.rel (%p16) target = $region17
  $region16: #{encoder_bert_forward.16} parent=0 // pred_region
    %vm19 = vcmask 523264
    %20 = vst.msk [vmem:[#allocation2] sm:$0xff] %vm19, 0.0
    %21 = vst.msk [vmem:[#allocation2 + $0x8] sm:$0xff] %vm19, 0.0
  $region17: #{encoder_bert_forward.16} parent=0 // pred_fallthru
    _
  %v22 = vld [vmem:[#allocation2] sm:$0xff]
  %v23 = vld [vmem:[#allocation2 + $0x8] sm:$0xff]
  %v24 = vld [vmem:[%s0] sm:$0xf]
  %v25 = vld [vmem:[%s0 + $0x4] sm:$0xf]
  %v26 = vld [vmem:[%s1] sm:$0xf]
  %v27 = vld [vmem:[%s1 + $0x4] sm:$0xf]
  %v28 = vld [vmem:[%s1 + $0x8] sm:$0xf]
  %v29 = vld [vmem:[%s1 + $0xc] sm:$0xf]
  %v32 = vunpack.c.l.b16 %v24
  %v33 = vunpack.c.l.b16 %v25
  %v34 = vpack.c.b16 %v33, %v32
  %v39 = vunpack.c.l.b16 %v26
  %v40 = vunpack.c.l.b16 %v27
  %v41 = vunpack.c.l.b16 %v28
  %v42 = vunpack.c.l.b16 %v29
  %v43 = vpack.c.b16 %v40, %v39
  %v44 = vpack.c.b16 %v42, %v41
  %vm47 = vcmask 261120
  %v49 = vsel %vm47, %v34, 0
  %51 = vmatprep.subr.bf16.mxu0 0
  %52 = vmatpush1.bf16.msra.mxu0 %v43
  %53 = vmatprep.subr.bf16.mxu0 0
  %54 = vmatpush1.bf16.msra.mxu0 %v44
  %55 = vmatprep.subr.bf16.mxu0 0
  %56 = vmatpush1.bf16.msra.mxu0 0
  %57 = vmatprep.subr.bf16.mxu0 0
  %58 = vmatpush1.bf16.msra.mxu0 0
  %59 = vmatprep.subr.bf16.mxu0 0
  %60 = vmatpush1.bf16.msra.mxu0 0
  %61 = vmatprep.subr.bf16.mxu0 0
  %62 = vmatpush1.bf16.msra.mxu0 0
  %63 = vmatprep.subr.bf16.mxu0 0
  %64 = vmatpush1.bf16.msra.mxu0 0
  %65 = vmatprep.subr.bf16.mxu0 0
  %66 = vmatpush1.bf16.msra.mxu0 0
  %67 = vmatprep.subr.bf16.mxu0 0
  %68 = vmatpush1.bf16.msra.mxu0 0
  %69 = vmatprep.subr.bf16.mxu0 0
  %70 = vmatpush1.bf16.msra.mxu0 0
  %71 = vmatprep.subr.bf16.mxu0 0
  %72 = vmatpush1.bf16.msra.mxu0 0
  %73 = vmatprep.subr.bf16.mxu0 0
  %74 = vmatpush1.bf16.msra.mxu0 0
  %75 = vmatprep.subr.bf16.mxu0 0
  %76 = vmatpush1.bf16.msra.mxu0 0
  %77 = vmatprep.subr.bf16.mxu0 0
  %78 = vmatpush1.bf16.msra.mxu0 0
  %79 = vmatprep.subr.bf16.mxu0 0
  %80 = vmatpush1.bf16.msra.mxu0 0
  %81 = vmatprep.subr.bf16.mxu0 0
  %82 = vmatpush1.bf16.msra.mxu0 0
  %83 = vmatprep.mubr.bf16.mxu0 0
  %84 = vmatmul.mubr.bf16.gmra.mrb[0].mxu0 %v49
  %v85 = vpop.f32.mrb[0].mxu0
  %v86 = vadd.f32 0.0, %v85
  %v87 = vpop.f32.mrb[0].mxu0
  %v88 = vpop.f32.mrb[0].mxu0
  %v89 = vadd.f32 0.0, %v88
  %v90 = vpop.f32.mrb[0].mxu0
  %91 = vdwg.mxu0
  %v92 = vadd.f32 %v22, %v86
  %v93 = vadd.f32 %v23, %v89
  %vm94 = vcmask 523264
  %95 = vst.msk [vmem:[#allocation2] sm:$0xff] %vm94, %v92
  %96 = vst.msk [vmem:[#allocation2 + $0x8] sm:$0xff] %vm94, %v93
  // Predicated region
  $region18: #{encoder_bert_forward.16} parent=0 // pred_check
    %p97 = pneg %p15
  $region19: #{encoder_bert_forward.16} parent=0 // pred_check_branch
    %99 = sbr.rel (%p97) target = $region21
  $region20: #{encoder_bert_forward.16} parent=0 // pred_region
    %v100 = vld [vmem:[#allocation2] sm:$0xff]
    %v101 = vld [vmem:[#allocation2 + $0x8] sm:$0xff]
    %v102 = vld [vmem:[%s2] sm:$0x1]
    %v104 = vlaneseq
    %v105 = vshrl.u32 %v104, 7
    %v106 = vsub.s32 0, %v105
    %v107 = vrot.slane %v102, %v106
    %v109 = vadd.f32 %v100, %v107
    %v110 = vadd.f32 %v101, %v107
    %v111 = vmul.f32 %v109, 0.5
    %v112 = vmul.f32 %v110, 0.5
    %v113 = vmul.f32 %v109, 0.044715
    %v114 = vmul.f32 %v110, 0.044715
    %v115 = vmul.f32 %v113, %v109
    %v116 = vmul.f32 %v114, %v110
    %v117 = vmul.f32 %v115, %v109
    %v118 = vmul.f32 %v116, %v110
    %v119 = vadd.f32 %v109, %v117
    %v120 = vadd.f32 %v110, %v118
    %v121 = vmul.f32 %v119, 0.7978846
    %v122 = vmul.f32 %v120, 0.7978846
    %v123 = vtanh.pop %v121
    %v124 = vtanh.pop %v122
    %v125 = vadd.f32 %v123, 1.0
    %v126 = vadd.f32 %v124, 1.0
    %v127 = vmul.f32 %v111, %v125
    %v128 = vmul.f32 %v112, %v126
    %v129 = vpack.c.bf16 %v128, %v127
    %v131 = vunpack.c.l.b16 %v129
    %v132 = vunpack.c.h.b16 %v129
    %v133 = vpack.c.b16 %v131, %v131
    %v134 = vpack.c.b16 %v132, %v132
    %vm137 = vcmask 519168
    %138 = vst.msk [vmem:[%s3] sm:$0xf] %vm137, %v133
    %139 = vst.msk [vmem:[%s3 + $0x4] sm:$0xf] %vm137, %v134
  $region21: #{encoder_bert_forward.16} parent=0 // pred_fallthru
    _
  // Predicated region
  $region22: #{encoder_bert_forward.16} parent=0 // pred_check
    _
  $region23: #{encoder_bert_forward.16} parent=0 // pred_check_branch
    %141 = sbr.rel (0) target = $region25
  $region24: #{encoder_bert_forward.16} parent=0 // pred_region
    _
  $region25: #{encoder_bert_forward.16} parent=0 // pred_fallthru
    _
  // Predicated region
  $region26: #{encoder_bert_forward.16} parent=0 // pred_check
    _
  $region27: #{encoder_bert_forward.16} parent=0 // pred_check_branch
    %143 = sbr.rel (0) target = $region29
  $region28: #{encoder_bert_forward.16} parent=0 // pred_region
    _
  $region29: #{encoder_bert_forward.16} parent=0 // pred_fallthru
    _

// kernel: encoder_bert_forward.17
$region0: #{encoder_bert_forward.17}
  #allocation0 [shape = 'u32[]', space=smem, size = 0x4, offset = 0x4, fixed_abs, tag = 'smem constant byte address 0x4 - core index']
  #allocation1 [shape = 'u32[144,128]{1,0:T(1,128)}', space=vmem, size = 0x12000, scoped, tag = 'internal scratch']
  #allocation2 [shape = 'f32[16,32]{1,0:T(8,128)}', space=vmem, size = 0x2000, scoped, tag = 'scratch operand']
  %s0 = inlined_call_operand.vmem [shape: bf16[16,64], index: 0, kind: input, shape index: {}]
  %s1 = inlined_call_operand.vmem [shape: bf16[64,32], index: 1, kind: input, shape index: {}]
  %s2 = inlined_call_operand.vmem [shape: f32[1,32], index: 2, kind: input, shape index: {}]
  %s3 = inlined_call_operand.vmem [shape: bf16[16,32], index: 3, kind: input, shape index: {}]
  %s4 = inlined_call_operand.vmem [shape: f32[1,32], index: 4, kind: input, shape index: {}]
  %s5 = inlined_call_operand.vmem [shape: f32[1,32], index: 5, kind: input, shape index: {}]
  %s6 = inlined_call_operand.vmem [shape: bf16[16,32], index: 6, kind: output, shape index: {}]
  %s7 = sld [smem:[#allocation0]]
  $region42: #{encoder_bert_forward.17} parent=0
    _
  %s9 = ssub.s32 1, %s7
  %s10 = scalar_select 0, %s9, %s7
  // Predicated region
  $region2: #{encoder_bert_forward.17} parent=0 // pred_check
    _
  $region3: #{encoder_bert_forward.17} parent=0 // pred_check_branch
    %12 = sbr.rel (0) target = $region5
  $region4: #{encoder_bert_forward.17} parent=0 // pred_region
    _
  $region5: #{encoder_bert_forward.17} parent=0 // pred_fallthru
    _
  // Predicated region
  $region6: #{encoder_bert_forward.17} parent=0 // pred_check
    _
  $region7: #{encoder_bert_forward.17} parent=0 // pred_check_branch
    %14 = sbr.rel (0) target = $region9
  $region8: #{encoder_bert_forward.17} parent=0 // pred_region
    _
  $region9: #{encoder_bert_forward.17} parent=0 // pred_fallthru
    _
  // Predicated region
  $region10: #{encoder_bert_forward.17} parent=0 // pred_check
    _
  $region11: #{encoder_bert_forward.17} parent=0 // pred_check_branch
    %16 = sbr.rel (0) target = $region13
  $region12: #{encoder_bert_forward.17} parent=0 // pred_region
    _
  $region13: #{encoder_bert_forward.17} parent=0 // pred_fallthru
    _
  // Predicated region
  $region14: #{encoder_bert_forward.17} parent=0 // pred_check
    _
  $region15: #{encoder_bert_forward.17} parent=0 // pred_check_branch
    %18 = sbr.rel (0) target = $region17
  $region16: #{encoder_bert_forward.17} parent=0 // pred_region
    _
  $region17: #{encoder_bert_forward.17} parent=0 // pred_fallthru
    _
  // Predicated region
  $region18: #{encoder_bert_forward.17} parent=0 // pred_check
    _
  $region19: #{encoder_bert_forward.17} parent=0 // pred_check_branch
    %20 = sbr.rel (0) target = $region21
  $region20: #{encoder_bert_forward.17} parent=0 // pred_region
    _
  $region21: #{encoder_bert_forward.17} parent=0 // pred_fallthru
    _
  // Predicated region
  $region22: #{encoder_bert_forward.17} parent=0 // pred_check
    _
  $region23: #{encoder_bert_forward.17} parent=0 // pred_check_branch
    %22 = sbr.rel (0) target = $region25
  $region24: #{encoder_bert_forward.17} parent=0 // pred_region
    _
  $region25: #{encoder_bert_forward.17} parent=0 // pred_fallthru
    _
  %p24 = scmp.eq.s32.totalorder 0, 0
  // Predicated region
  $region26: #{encoder_bert_forward.17} parent=0 // pred_check
    %p25 = pneg %p24
  $region27: #{encoder_bert_forward.17} parent=0 // pred_check_branch
    %27 = sbr.rel (%p25) target = $region29
  $region28: #{encoder_bert_forward.17} parent=0 // pred_region
    %vm28 = vcmask 261120
    %29 = vst.msk [vmem:[#allocation2] sm:$0xff] %vm28, 0.0
    %30 = vst.msk [vmem:[#allocation2 + $0x8] sm:$0xff] %vm28, 0.0
  $region29: #{encoder_bert_forward.17} parent=0 // pred_fallthru
    _
  %v31 = vld [vmem:[#allocation2] sm:$0xff]
  %v32 = vld [vmem:[#allocation2 + $0x8] sm:$0xff]
  %v33 = vld [vmem:[%s0] sm:$0xf]
  %v34 = vld [vmem:[%s0 + $0x4] sm:$0xf]
  %v35 = vld [vmem:[%s1] sm:$0xf]
  %v36 = vld [vmem:[%s1 + $0x4] sm:$0xf]
  %v37 = vld [vmem:[%s1 + $0x8] sm:$0xf]
  %v38 = vld [vmem:[%s1 + $0xc] sm:$0xf]
  %v39 = vld [vmem:[%s1 + $0x10] sm:$0xf]
  %v40 = vld [vmem:[%s1 + $0x14] sm:$0xf]
  %v41 = vld [vmem:[%s1 + $0x18] sm:$0xf]
  %v42 = vld [vmem:[%s1 + $0x1c] sm:$0xf]
  %v45 = vunpack.c.l.b16 %v33
  %v46 = vunpack.c.l.b16 %v34
  %v47 = vpack.c.b16 %v46, %v45
  %v56 = vunpack.c.l.b16 %v35
  %v57 = vunpack.c.l.b16 %v36
  %v58 = vunpack.c.l.b16 %v37
  %v59 = vunpack.c.l.b16 %v38
  %v60 = vunpack.c.l.b16 %v39
  %v61 = vunpack.c.l.b16 %v40
  %v62 = vunpack.c.l.b16 %v41
  %v63 = vunpack.c.l.b16 %v42
  %v64 = vpack.c.b16 %v57, %v56
  %v65 = vpack.c.b16 %v59, %v58
  %v66 = vpack.c.b16 %v61, %v60
  %v67 = vpack.c.b16 %v63, %v62
  %vm72 = vcmask 523264
  %v74 = vsel %vm72, %v47, 0
  %76 = vmatprep.subr.bf16.mxu0 0
  %77 = vmatpush1.bf16.msra.mxu0 %v64
  %78 = vmatprep.subr.bf16.mxu0 0
  %79 = vmatpush1.bf16.msra.mxu0 %v65
  %80 = vmatprep.subr.bf16.mxu0 0
  %81 = vmatpush1.bf16.msra.mxu0 %v66
  %82 = vmatprep.subr.bf16.mxu0 0
  %83 = vmatpush1.bf16.msra.mxu0 %v67
  %84 = vmatprep.subr.bf16.mxu0 0
  %85 = vmatpush1.bf16.msra.mxu0 0
  %86 = vmatprep.subr.bf16.mxu0 0
  %87 = vmatpush1.bf16.msra.mxu0 0
  %88 = vmatprep.subr.bf16.mxu0 0
  %89 = vmatpush1.bf16.msra.mxu0 0
  %90 = vmatprep.subr.bf16.mxu0 0
  %91 = vmatpush1.bf16.msra.mxu0 0
  %92 = vmatprep.subr.bf16.mxu0 0
  %93 = vmatpush1.bf16.msra.mxu0 0
  %94 = vmatprep.subr.bf16.mxu0 0
  %95 = vmatpush1.bf16.msra.mxu0 0
  %96 = vmatprep.subr.bf16.mxu0 0
  %97 = vmatpush1.bf16.msra.mxu0 0
  %98 = vmatprep.subr.bf16.mxu0 0
  %99 = vmatpush1.bf16.msra.mxu0 0
  %100 = vmatprep.subr.bf16.mxu0 0
  %101 = vmatpush1.bf16.msra.mxu0 0
  %102 = vmatprep.subr.bf16.mxu0 0
  %103 = vmatpush1.bf16.msra.mxu0 0
  %104 = vmatprep.subr.bf16.mxu0 0
  %105 = vmatpush1.bf16.msra.mxu0 0
  %106 = vmatprep.subr.bf16.mxu0 0
  %107 = vmatpush1.bf16.msra.mxu0 0
  %108 = vmatprep.mubr.bf16.mxu0 0
  %109 = vmatmul.mubr.bf16.gmra.mrb[0].mxu0 %v74
  %v110 = vpop.f32.mrb[0].mxu0
  %v111 = vadd.f32 0.0, %v110
  %v112 = vpop.f32.mrb[0].mxu0
  %v113 = vpop.f32.mrb[0].mxu0
  %v114 = vadd.f32 0.0, %v113
  %v115 = vpop.f32.mrb[0].mxu0
  %116 = vdwg.mxu0
  %v117 = vadd.f32 %v31, %v111
  %v118 = vadd.f32 %v32, %v114
  %vm119 = vcmask 261120
  %120 = vst.msk [vmem:[#allocation2] sm:$0xff] %vm119, %v117
  %121 = vst.msk [vmem:[#allocation2 + $0x8] sm:$0xff] %vm119, %v118
  // Predicated region
  $region30: #{encoder_bert_forward.17} parent=0 // pred_check
    %p122 = pneg %p24
  $region31: #{encoder_bert_forward.17} parent=0 // pred_check_branch
    %124 = sbr.rel (%p122) target = $region33
  $region32: #{encoder_bert_forward.17} parent=0 // pred_region
    %v125 = vld [vmem:[#allocation2] sm:$0xff]
    %v126 = vld [vmem:[#allocation2 + $0x8] sm:$0xff]
    %v127 = vld [vmem:[%s2] sm:$0x1]
    %v129 = vlaneseq
    %v130 = vshrl.u32 %v129, 7
    %v131 = vsub.s32 0, %v130
    %v132 = vrot.slane %v127, %v131
    %v134 = vadd.f32 %v125, %v132
    %v135 = vadd.f32 %v126, %v132
    %v136 = vld [vmem:[%s3] sm:$0xf]
    %v137 = vld [vmem:[%s3 + $0x4] sm:$0xf]
    %v138 = vunpack.c.l.bf16 %v136
    %v139 = vunpack.c.l.bf16 %v137
    %v140 = vadd.f32 %v134, %v138
    %v141 = vadd.f32 %v135, %v139
    %v142 = vsel %vm119, %v140, 0.0
    %143 = vadd.xlane.f32.xlu0 %v142
    %v144 = vpop.xlane.xlu0 %143
    %v145 = vsel %vm119, %v141, 0.0
    %146 = vadd.xlane.f32.xlu0 %v145
    %v147 = vpop.xlane.xlu0 %146
    %v148 = vrcp.pop 32.0
    %v149 = vmul.f32 %v144, %v148
    %v150 = vmul.f32 %v147, %v148
    %v151 = vsub.f32 %v140, %v149
    %v152 = vsub.f32 %v141, %v150
    %v153 = vmul.f32 %v151, %v151
    %v154 = vmul.f32 %v152, %v152
    %v155 = vsel %vm119, %v153, 0.0
    %156 = vadd.xlane.f32.xlu0 %v155
    %v157 = vpop.xlane.xlu0 %156
    %v158 = vsel %vm119, %v154, 0.0
    %159 = vadd.xlane.f32.xlu0 %v158
    %v160 = vpop.xlane.xlu0 %159
    %v161 = vmul.f32 %v157, %v148
    %v162 = vmul.f32 %v160, %v148
    %v163 = vadd.f32 %v161, 1e-12
    %v164 = vadd.f32 %v162, 1e-12
    %v165 = vrsqrt.pop %v163
    %v166 = vrsqrt.pop %v164
    %v167 = vmul.f32 %v151, %v165
    %v168 = vmul.f32 %v152, %v166
    %v169 = vld [vmem:[%s4] sm:$0x1]
    %v171 = vlaneseq
    %v172 = vshrl.u32 %v171, 7
    %v173 = vsub.s32 0, %v172
    %v174 = vrot.slane %v169, %v173
    %v176 = vmul.f32 %v167, %v174
    %v177 = vmul.f32 %v168, %v174
    %v178 = vld [vmem:[%s5] sm:$0x1]
    %v180 = vlaneseq
    %v181 = vshrl.u32 %v180, 7
    %v182 = vsub.s32 0, %v181
    %v183 = vrot.slane %v178, %v182
    %v185 = vadd.f32 %v176, %v183
    %v186 = vadd.f32 %v177, %v183
    %v187 = vpack.c.bf16 %v186, %v185
    %v189 = vunpack.c.l.b16 %v187
    %v190 = vunpack.c.h.b16 %v187
    %v191 = vpack.c.b16 %v189, %v189
    %v192 = vpack.c.b16 %v190, %v190
    %vm195 = vcmask 257024
    %196 = vst.msk [vmem:[%s6] sm:$0xf] %vm195, %v191
    %197 = vst.msk [vmem:[%s6 + $0x4] sm:$0xf] %vm195, %v192
  $region33: #{encoder_bert_forward.17} parent=0 // pred_fallthru
    _
  // Predicated region
  $region34: #{encoder_bert_forward.17} parent=0 // pred_check
    _
  $region35: #{encoder_bert_forward.17} parent=0 // pred_check_branch
    %199 = sbr.rel (0) target = $region37
  $region36: #{encoder_bert_forward.17} parent=0 // pred_region
    _
  $region37: #{encoder_bert_forward.17} parent=0 // pred_fallthru
    _
  // Predicated region
  $region38: #{encoder_bert_forward.17} parent=0 // pred_check
    _
  $region39: #{encoder_bert_forward.17} parent=0 // pred_check_branch
    %201 = sbr.rel (0) target = $region41
  $region40: #{encoder_bert_forward.17} parent=0 // pred_region
    _
  $region41: #{encoder_bert_forward.17} parent=0 // pred_fallthru
    _

// kernel: encoder_bert_forward.23
$region0: #{encoder_bert_forward.23}
  #allocation0 [shape = 'u32[]', space=smem, size = 0x4, offset = 0x4, fixed_abs, tag = 'smem constant byte address 0x4 - core index']
  #allocation1 [shape = 'u32[144,128]{1,0:T(1,128)}', space=vmem, size = 0x12000, scoped, tag = 'internal scratch']
  #allocation2 [shape = 'f32[2,32]{1,0:T(2,128)}', space=vmem, size = 0x400, scoped, tag = 'scratch operand']
  %s0 = inlined_call_operand.vmem [shape: bf16[2,32], index: 0, kind: input, shape index: {}]
  %s1 = inlined_call_operand.vmem [shape: bf16[32,32], index: 1, kind: input, shape index: {}]
  %s2 = inlined_call_operand.vmem [shape: f32[1,32], index: 2, kind: input, shape index: {}]
  %s3 = inlined_call_operand.hbm [shape: f32[2,32], index: 3, kind: output, shape index: {}]
  %s4 = sld [smem:[#allocation0]]
  $region30: #{encoder_bert_forward.23} parent=0
    _
  %s6 = ssub.s32 1, %s4
  %s7 = scalar_select 0, %s6, %s4
  $region1: #{encoder_bert_forward.23} parent=0
    #allocation3 [shape = 'u8[1024]{0}', space=vmem, size = 0x400, scoped, tag = 'output window, operand 0, single buffered']
    #allocation4 [shape = 's32[1]{0}', space=sflag, size = 0x4, scoped, tag = 'scoped memory for encoder_bert_forward.23']
    %8 = vsyncpa [#allocation4], 0
    // Predicated region
    $region2: #{encoder_bert_forward.23} parent=1 // pred_check
      _
    $region3: #{encoder_bert_forward.23} parent=1 // pred_check_branch
      %10 = sbr.rel (0) target = $region5
    $region4: #{encoder_bert_forward.23} parent=1 // pred_region
      _
    $region5: #{encoder_bert_forward.23} parent=1 // pred_fallthru
      _
    // Predicated region
    $region6: #{encoder_bert_forward.23} parent=1 // pred_check
      _
    $region7: #{encoder_bert_forward.23} parent=1 // pred_check_branch
      %12 = sbr.rel (0) target = $region9
    $region8: #{encoder_bert_forward.23} parent=1 // pred_region
      _
    $region9: #{encoder_bert_forward.23} parent=1 // pred_fallthru
      _
    // Predicated region
    $region10: #{encoder_bert_forward.23} parent=1 // pred_check
      _
    $region11: #{encoder_bert_forward.23} parent=1 // pred_check_branch
      %14 = sbr.rel (0) target = $region13
    $region12: #{encoder_bert_forward.23} parent=1 // pred_region
      _
    $region13: #{encoder_bert_forward.23} parent=1 // pred_fallthru
      _
    %p16 = scmp.eq.s32.totalorder 0, 0
    // Predicated region
    $region14: #{encoder_bert_forward.23} parent=1 // pred_check
      %p17 = pneg %p16
    $region15: #{encoder_bert_forward.23} parent=1 // pred_check_branch
      %19 = sbr.rel (%p17) target = $region17
    $region16: #{encoder_bert_forward.23} parent=1 // pred_region
      %vm20 = vcmask 254976
      %21 = vst.msk [vmem:[#allocation2] sm:$0x3] %vm20, 0.0
    $region17: #{encoder_bert_forward.23} parent=1 // pred_fallthru
      _
    %v22 = vld [vmem:[#allocation2] sm:$0x3]
    %v23 = vld [vmem:[%s0] sm:$0x1]
    %v24 = vld [vmem:[%s1] sm:$0xf]
    %v25 = vld [vmem:[%s1 + $0x4] sm:$0xf]
    %v26 = vld [vmem:[%s1 + $0x8] sm:$0xf]
    %v27 = vld [vmem:[%s1 + $0xc] sm:$0xf]
    %v32 = vunpack.c.l.b16 %v24
    %v33 = vunpack.c.l.b16 %v25
    %v34 = vunpack.c.l.b16 %v26
    %v35 = vunpack.c.l.b16 %v27
    %v36 = vpack.c.b16 %v33, %v32
    %v37 = vpack.c.b16 %v35, %v34
    %vm40 = vcmask 261120
    %v42 = vsel %vm40, %v23, 0
    %44 = vmatprep.subr.bf16.mxu0 0
    %45 = vmatpush1.bf16.msra.mxu0 %v36
    %46 = vmatprep.subr.bf16.mxu0 0
    %47 = vmatpush1.bf16.msra.mxu0 %v37
    %48 = vmatprep.subr.bf16.mxu0 0
    %49 = vmatpush1.bf16.msra.mxu0 0
    %50 = vmatprep.subr.bf16.mxu0 0
    %51 = vmatpush1.bf16.msra.mxu0 0
    %52 = vmatprep.subr.bf16.mxu0 0
    %53 = vmatpush1.bf16.msra.mxu0 0
    %54 = vmatprep.subr.bf16.mxu0 0
    %55 = vmatpush1.bf16.msra.mxu0 0
    %56 = vmatprep.subr.bf16.mxu0 0
    %57 = vmatpush1.bf16.msra.mxu0 0
    %58 = vmatprep.subr.bf16.mxu0 0
    %59 = vmatpush1.bf16.msra.mxu0 0
    %60 = vmatprep.subr.bf16.mxu0 0
    %61 = vmatpush1.bf16.msra.mxu0 0
    %62 = vmatprep.subr.bf16.mxu0 0
    %63 = vmatpush1.bf16.msra.mxu0 0
    %64 = vmatprep.subr.bf16.mxu0 0
    %65 = vmatpush1.bf16.msra.mxu0 0
    %66 = vmatprep.subr.bf16.mxu0 0
    %67 = vmatpush1.bf16.msra.mxu0 0
    %68 = vmatprep.subr.bf16.mxu0 0
    %69 = vmatpush1.bf16.msra.mxu0 0
    %70 = vmatprep.subr.bf16.mxu0 0
    %71 = vmatpush1.bf16.msra.mxu0 0
    %72 = vmatprep.subr.bf16.mxu0 0
    %73 = vmatpush1.bf16.msra.mxu0 0
    %74 = vmatprep.subr.bf16.mxu0 0
    %75 = vmatpush1.bf16.msra.mxu0 0
    %76 = vmatprep.mubr.bf16.mxu0 0
    %77 = vmatmul.mubr.bf16.gmra.mrb[0].mxu0 %v42
    %v78 = vpop.f32.mrb[0].mxu0
    %v79 = vadd.f32 0.0, %v78
    %v80 = vpop.f32.mrb[0].mxu0
    %v81 = vpop.f32.mrb[0].mxu0
    %v82 = vpop.f32.mrb[0].mxu0
    %83 = vdwg.mxu0
    %v84 = vadd.f32 %v22, %v79
    %vm85 = vcmask 254976
    %86 = vst.msk [vmem:[#allocation2] sm:$0x3] %vm85, %v84
    // Predicated region
    $region18: #{encoder_bert_forward.23} parent=1 // pred_check
      %p87 = pneg %p16
    $region19: #{encoder_bert_forward.23} parent=1 // pred_check_branch
      %89 = sbr.rel (%p87) target = $region21
    $region20: #{encoder_bert_forward.23} parent=1 // pred_region
      %v90 = vld [vmem:[#allocation2] sm:$0x3]
      %v91 = vld [vmem:[%s2] sm:$0x1]
      %v93 = vlaneseq
      %v94 = vshrl.u32 %v93, 7
      %v95 = vsub.s32 0, %v94
      %v96 = vrot.slane %v91, %v95
      %v98 = vadd.f32 %v90, %v96
      %v99 = vtanh.pop %v98
      %100 = vst.msk [vmem:[#allocation3] sm:$0x3] %vm85, %v99
    $region21: #{encoder_bert_forward.23} parent=1 // pred_fallthru
      _
    // Predicated region
    $region22: #{encoder_bert_forward.23} parent=1 // pred_check
      _
    $region23: #{encoder_bert_forward.23} parent=1 // pred_check_branch
      %102 = sbr.rel (0) target = $region25
    $region24: #{encoder_bert_forward.23} parent=1 // pred_region
      %s104 = ssub.s32 32, 32
      %105 = vsyncadd [#allocation4], %s104
      %s107 = sshll.u32 [#allocation3], 4
      %s108 = int_to_ptr.vmem [resolvable:$true] %s107
      %110 = dma.vmem_to_hbm [thread:$0]  %s108, 32, %s3, [#allocation4]
    $region25: #{encoder_bert_forward.23} parent=1 // pred_fallthru
      _
    // Predicated region
    $region26: #{encoder_bert_forward.23} parent=1 // pred_check
      _
    $region27: #{encoder_bert_forward.23} parent=1 // pred_check_branch
      %112 = sbr.rel (0) target = $region29
    $region28: #{encoder_bert_forward.23} parent=1 // pred_region
      %113 = dma.done [#allocation4], 32
    $region29: #{encoder_bert_forward.23} parent=1 // pred_fallthru
      _
    %114 = vsyncpa [#allocation4], 1

</llo_original>
